<compile_context>
chip_gen: v6e
topology: v6e:2x2x1
jax: 0.10.0
libtpu: 0.0.40
codegen_flags: <defaults>
</compile_context>

<pallas_src>
from functools import partial

import jax
import jax.numpy as jnp
from jax.experimental import pallas as pl
from jax.experimental.pallas import tpu as pltpu


def _modulated_layernorm(x, scale_plus_one, shift, eps):
    """LayerNorm (no affine) with fused one-pass stats, then AdaLN modulation."""
    mu = jnp.mean(x, axis=-1, keepdims=True)
    ms = jnp.mean(x * x, axis=-1, keepdims=True)
    var = jnp.maximum(ms - mu * mu, 0.0)        # clamp: one-pass var can cancel < 0
    xn = (x - mu) * jax.lax.rsqrt(var + eps)
    return xn * scale_plus_one + shift


# --------------------------------------------------------------------------- #
# Kernel 1: adaLN(norm1) + QKV projection, tiled over (batch, token tiles).
# Emits Q/K/V head-major (B, H, S, dh).
# --------------------------------------------------------------------------- #
def _qkv_kernel(x_ref, mod_ref, wqkv_ref, bqkv_ref, q_ref, k_ref, v_ref, *,
                num_heads, eps):
    x = x_ref[0]                               # (TS, D) f32
    mod = mod_ref[0]                           # (6, D)  f32
    shift1 = mod[0:1, :]
    scale1_p1 = mod[1:2, :]                    # already 1 + scale1

    h = _modulated_layernorm(x, scale1_p1, shift1, eps)            # (TS, D) f32
    qkv = jnp.dot(h.astype(jnp.bfloat16), wqkv_ref[...],
                  preferred_element_type=jnp.float32)              # MXU bf16xbf16
    qkv = qkv + bqkv_ref[...]                                      # (TS, 3D) f32

    D = x.shape[-1]
    dh = D // num_heads
    # Head-major stores: leading-axis writes so kernel 2 indexes heads for free.
    for hd in range(num_heads):
        lo = hd * dh
        q_ref[0, hd] = qkv[:, lo:lo + dh].astype(q_ref.dtype)
        k_ref[0, hd] = qkv[:, D + lo:D + lo + dh].astype(k_ref.dtype)
        v_ref[0, hd] = qkv[:, 2 * D + lo:2 * D + lo + dh].astype(v_ref.dtype)


# --------------------------------------------------------------------------- #
# Kernel 2: attention + out-proj + residual + adaLN(norm2) + MLP + residual,
#           per (batch, query tile). K/V are the full sequence for this batch.
# --------------------------------------------------------------------------- #
def _attn_mlp_kernel(x_ref, q_ref, k_ref, v_ref, mod_ref, wo_ref, bo_ref,
                     w1_ref, b1_ref, w2_ref, b2_ref, o_ref, acc_ref, *,
                     num_heads, eps):
    x = x_ref[0]                               # (TQ, D) f32  residual input
    mod = mod_ref[0]                           # (6, D)  f32
    gate1 = mod[2:3, :]
    shift2 = mod[3:4, :]
    scale2_p1 = mod[4:5, :]                    # already 1 + scale2
    gate2 = mod[5:6, :]

    TQ, D = x.shape
    dh = D // num_heads

    # Per-head attention. Softmax scale is already folded into Wqkv's Q columns.
    # Each head's (TQ, dh) context is written straight into the (TQ, D) VMEM
    # scratch (no carried f32 accumulator, no lane-dim head slicing); the output
    # projection runs ONCE after the loop with a full K=D contraction.
    for hd in range(num_heads):
        qh = q_ref[0, hd]                      # (TQ, dh) bf16  (leading-dim view)
        kh = k_ref[0, hd]                      # (S,  dh) bf16
        vh = v_ref[0, hd]                      # (S,  dh) bf16
        scores = jax.lax.dot_general(          # 'qd,kd->qk' -> no explicit .T
            qh, kh, (((1,), (1,)), ((), ())),
            preferred_element_type=jnp.float32)                    # (TQ, S) f32
        scores = scores - jnp.max(scores, axis=-1, keepdims=True)
        p = jnp.exp(scores)
        denom = jnp.sum(p, axis=-1, keepdims=True)
        p = p * pl.reciprocal(denom, approx=True)                  # EUP reciprocal
        acc_ref[:, hd * dh:(hd + 1) * dh] = jnp.dot(
            p.astype(jnp.bfloat16), vh, preferred_element_type=jnp.float32)

    attn = jnp.dot(acc_ref[...].astype(jnp.bfloat16), wo_ref[...],
                   preferred_element_type=jnp.float32) + bo_ref[...]
    x1 = attn * gate1 + x                                          # residual 1

    # ----- MLP branch -----
    h2 = _modulated_layernorm(x1, scale2_p1, shift2, eps)
    m1 = jnp.dot(h2.astype(jnp.bfloat16), w1_ref[...],
                 preferred_element_type=jnp.float32) + b1_ref[...]
    m1 = jax.nn.gelu(m1, approximate=True)
    m2 = jnp.dot(m1.astype(jnp.bfloat16), w2_ref[...],
                 preferred_element_type=jnp.float32) + b2_ref[...]

    o_ref[0] = (m2 * gate2 + x1).astype(o_ref.dtype)               # residual 2


# --------------------------------------------------------------------------- #
# Host wrapper
# --------------------------------------------------------------------------- #
def _pick_vmem_limit_bytes():
    """Per-generation VMEM budget with headroom for Mosaic-internal scratch."""
    try:
        cap = int(pltpu.get_tpu_info().vmem_capacity_bytes)
        return int(min(cap - (8 << 20), 100 << 20))   # v7x ~56 MiB, v5e/v6e 100 MiB
    except Exception:
        return 64 << 20


def transformer_block(X, y, params, *, num_heads, eps=1e-5,
                      q_tile=256, s_tile=512,
                      vmem_limit_bytes=None,
                      single_buffer_weights=True):
    B, S, D = X.shape
    hidden = params["w1"].shape[1]
    assert D % num_heads == 0, "dim must be divisible by num_heads"
    dh = D // num_heads

    TS = S if S <= s_tile else s_tile          # token tile for QKV projection
    TQ = S if S <= q_tile else q_tile          # query tile for attention/MLP
    assert S % TS == 0 and S % TQ == 0, "S must be divisible by the tile sizes"

    f32, bf16 = jnp.float32, jnp.bfloat16
    if vmem_limit_bytes is None:
        vmem_limit_bytes = _pick_vmem_limit_bytes()

    # --- conditioning glue: tiny (B,C)x(C,D) matmuls, plain JAX ---
    mod1 = y @ params["wn1"] + params["bn1"]          # (B, 2D): [shift1 | scale1]
    mod2 = y @ params["wn2"] + params["bn2"]          # (B, 2D): [shift2 | scale2]
    gate1 = y @ params["wg1"] + params["bg1"]         # (B, D)  == scale1(y)
    gate2 = y @ params["wg2"] + params["bg2"]         # (B, D)  == scale2(y)
    mod = jnp.stack(
        [mod1[:, :D], 1.0 + mod1[:, D:], gate1,
         mod2[:, :D], 1.0 + mod2[:, D:], gate2],
        axis=1,
    ).astype(f32)                                     # (B, 6, D)

    # Fold the softmax scale 1/sqrt(dh) into the Q columns of Wqkv / bqkv.
    sm_scale = 1.0 / (dh ** 0.5)
    col_scale = jnp.concatenate(
        [jnp.full((D,), sm_scale, f32), jnp.ones((2 * D,), f32)])
    wqkv = (params["wqkv"] * col_scale[None, :]).astype(bf16)
    bqkv = (params["bqkv"] * col_scale).reshape(1, -1).astype(f32)
    wo = params["wo"].astype(bf16)
    w1 = params["w1"].astype(bf16)
    w2 = params["w2"].astype(bf16)
    bo = params["bo"].reshape(1, -1).astype(f32)
    b1 = params["b1"].reshape(1, -1).astype(f32)
    b2 = params["b2"].reshape(1, -1).astype(f32)

    def wspec(shape):
        # Constant-index weight/bias operands: single-buffer to halve their
        # VMEM footprint (no benefit from double buffering a fixed block).
        if single_buffer_weights:
            return pl.BlockSpec(shape, lambda b, i: (0, 0),
                                pipeline_mode=pl.Buffered(1))
        return pl.BlockSpec(shape, lambda b, i: (0, 0))

    cparams = pltpu.CompilerParams(
        dimension_semantics=("parallel", "parallel"),
        vmem_limit_bytes=int(vmem_limit_bytes),
    )

    # ---------------- kernel 1: adaLN(norm1) + QKV ----------------
    ce1 = pl.CostEstimate(
        flops=2 * B * S * D * 3 * D,
        transcendentals=B * S,
        bytes_accessed=4 * B * S * D + 2 * D * 3 * D + 3 * 2 * B * S * D)

    q, k, v = pl.pallas_call(
        partial(_qkv_kernel, num_heads=num_heads, eps=eps),
        out_shape=tuple(jax.ShapeDtypeStruct((B, num_heads, S, dh), bf16)
                        for _ in range(3)),
        grid_spec=pltpu.PrefetchScalarGridSpec(
            num_scalar_prefetch=0,
            grid=(B, S // TS),
            in_specs=[
                pl.BlockSpec((1, TS, D), lambda b, s: (b, s, 0)),      # X tile
                pl.BlockSpec((1, 6, D), lambda b, s: (b, 0, 0)),       # modulation
                wspec((D, 3 * D)),                                     # Wqkv bf16
                wspec((1, 3 * D)),                                     # bqkv
            ],
            out_specs=[
                pl.BlockSpec((1, num_heads, TS, dh), lambda b, s: (b, 0, s, 0)),
                pl.BlockSpec((1, num_heads, TS, dh), lambda b, s: (b, 0, s, 0)),
                pl.BlockSpec((1, num_heads, TS, dh), lambda b, s: (b, 0, s, 0)),
            ],
        ),
        compiler_params=cparams,
        cost_estimate=ce1,
    )(X, mod, wqkv, bqkv)

    # -------- kernel 2: attention + out-proj + adaLN(norm2) + MLP --------
    ce2 = pl.CostEstimate(
        flops=4 * B * S * S * D + 2 * B * S * D * D + 4 * B * S * D * hidden,
        transcendentals=B * S * S + B * S * hidden,
        bytes_accessed=(4 * B * S * D + 3 * 2 * B * S * D
                        + 2 * (D * D + 2 * D * hidden) + 4 * B * S * D))

    out = pl.pallas_call(
        partial(_attn_mlp_kernel, num_heads=num_heads, eps=eps),
        out_shape=jax.ShapeDtypeStruct((B, S, D), X.dtype),
        grid_spec=pltpu.PrefetchScalarGridSpec(
            num_scalar_prefetch=0,
            grid=(B, S // TQ),
            in_specs=[
                pl.BlockSpec((1, TQ, D), lambda b, i: (b, i, 0)),             # X tile
                pl.BlockSpec((1, num_heads, TQ, dh), lambda b, i: (b, 0, i, 0)),  # Q
                pl.BlockSpec((1, num_heads, S, dh), lambda b, i: (b, 0, 0, 0)),   # K
                pl.BlockSpec((1, num_heads, S, dh), lambda b, i: (b, 0, 0, 0)),   # V
                pl.BlockSpec((1, 6, D), lambda b, i: (b, 0, 0)),              # modulation
                wspec((D, D)),                                                # Wo
                wspec((1, D)),                                                # bo
                wspec((D, hidden)),                                           # W1
                wspec((1, hidden)),                                           # b1
                wspec((hidden, D)),                                           # W2
                wspec((1, D)),                                                # b2
            ],
            out_specs=pl.BlockSpec((1, TQ, D), lambda b, i: (b, i, 0)),
            scratch_shapes=[pltpu.VMEM((TQ, D), jnp.float32)],  # per-head PV slabs
        ),
        compiler_params=cparams,
        cost_estimate=ce2,
    )(X, q, k, v, mod, wo, bo, w1, b1, w2, b2)

    return out


# --------------------------------------------------------------------------- #
# Pure-JAX f32 reference (identical math, for verification)
# --------------------------------------------------------------------------- #
def transformer_block_ref(X, y, params, *, num_heads, eps=1e-5):
    B, S, D = X.shape
    dh = D // num_heads

    def ln(v):
        mu = jnp.mean(v, axis=-1, keepdims=True)
        var = jnp.mean((v - mu) ** 2, axis=-1, keepdims=True)
        return (v - mu) * jax.lax.rsqrt(var + eps)

    mod1 = y @ params["wn1"] + params["bn1"]
    mod2 = y @ params["wn2"] + params["bn2"]
    gate1 = (y @ params["wg1"] + params["bg1"])[:, None, :]
    gate2 = (y @ params["wg2"] + params["bg2"])[:, None, :]
    sh1, sc1 = mod1[:, None, :D], mod1[:, None, D:]
    sh2, sc2 = mod2[:, None, :D], mod2[:, None, D:]

    h = ln(X) * (1.0 + sc1) + sh1
    qkv = h @ params["wqkv"] + params["bqkv"]
    q, k, v = qkv[..., :D], qkv[..., D:2 * D], qkv[..., 2 * D:]
    q = q.reshape(B, S, num_heads, dh).transpose(0, 2, 1, 3)
    k = k.reshape(B, S, num_heads, dh).transpose(0, 2, 1, 3)
    v = v.reshape(B, S, num_heads, dh).transpose(0, 2, 1, 3)
    s = jnp.einsum("bhqd,bhkd->bhqk", q, k) / (dh ** 0.5)
    p = jax.nn.softmax(s, axis=-1)
    a = jnp.einsum("bhqk,bhkd->bhqd", p, v).transpose(0, 2, 1, 3).reshape(B, S, D)
    a = a @ params["wo"] + params["bo"]
    x1 = a * gate1 + X

    h2 = ln(x1) * (1.0 + sc2) + sh2
    m = jax.nn.gelu(h2 @ params["w1"] + params["b1"], approximate=True)
    m = m @ params["w2"] + params["b2"]
    return m * gate2 + x1


def init_params(key, dim, c_dim, hidden, std=0.02):
    ks = jax.random.split(key, 8)
    n = lambda k, s: (jax.random.normal(k, s, jnp.float32) * std)
    return {
        "wqkv": n(ks[0], (dim, 3 * dim)), "bqkv": jnp.zeros((3 * dim,), jnp.float32),
        "wo": n(ks[1], (dim, dim)), "bo": jnp.zeros((dim,), jnp.float32),
        "w1": n(ks[2], (dim, hidden)), "b1": jnp.zeros((hidden,), jnp.float32),
        "w2": n(ks[3], (hidden, dim)), "b2": jnp.zeros((dim,), jnp.float32),
        "wn1": n(ks[4], (c_dim, 2 * dim)), "bn1": jnp.zeros((2 * dim,), jnp.float32),
        "wn2": n(ks[5], (c_dim, 2 * dim)), "bn2": jnp.zeros((2 * dim,), jnp.float32),
        "wg1": n(ks[6], (c_dim, dim)), "bg1": jnp.zeros((dim,), jnp.float32),
        "wg2": n(ks[7], (c_dim, dim)), "bg2": jnp.zeros((dim,), jnp.float32),
    }


if __name__ == "__main__":
    B, S, D, C = 2, 16, 64, 32
    NUM_HEADS = 8
    HIDDEN = int(D * 4.0)

    key = jax.random.PRNGKey(0)
    kx, ky, kp = jax.random.split(key, 3)
    X = jax.random.normal(kx, (B, S, D), jnp.float32)
    y = jax.random.normal(ky, (B, C), jnp.float32)
    params = init_params(kp, D, C, HIDDEN)

    ref = transformer_block_ref(X, y, params, num_heads=NUM_HEADS)

    def run_and_check(single_buffer):
        o = jax.block_until_ready(
            transformer_block(X, y, params, num_heads=NUM_HEADS,
                              single_buffer_weights=single_buffer))
        assert o.shape == (B, S, D)
        assert bool(jnp.all(jnp.isfinite(o)))
        # bf16 matmul operands with f32 accumulation -> looser tolerance than f32.
        max_err = float(jnp.max(jnp.abs(o - ref)))
        assert max_err < 1e-2, max_err
        return o

    try:
        out = run_and_check(True)
    except Exception:
        # TODO(synk): pl.Buffered(1) single-buffering unsupported on this jax
        # build; fall back to default double-buffered weight pipelining.
        out = run_and_check(False)

    print("KERNEL_OK")
</pallas_src>

<mosaic_0001>
module attributes {stable_mosaic.version = 11 : i64} {
  func.func @_qkv_kernel(%arg0: i32, %arg1: i32, %arg2: memref<1x16x64xf32, #tpu.memory_space<vmem>>, %arg3: memref<1x6x64xf32, #tpu.memory_space<vmem>>, %arg4: memref<64x192xbf16, #tpu.memory_space<vmem>>, %arg5: memref<1x192xf32, #tpu.memory_space<vmem>>, %arg6: memref<1x8x16x8xbf16, #tpu.memory_space<vmem>>, %arg7: memref<1x8x16x8xbf16, #tpu.memory_space<vmem>>, %arg8: memref<1x8x16x8xbf16, #tpu.memory_space<vmem>>) attributes {dimension_semantics = [#tpu.dimension_semantics<parallel>, #tpu.dimension_semantics<parallel>], iteration_bounds = array<i64: 2, 1>, scalar_prefetch = 0 : i64, scratch_operands = 0 : i64, tpu.core_type = #tpu.core_type<tc>, window_params = [{transform_indices = @transform_0, window_bounds = array<i64: 1, 16, 64>}, {transform_indices = @transform_1, window_bounds = array<i64: 1, 6, 64>}, {pipeline_mode = #tpu.pipeline_mode<synchronous>, transform_indices = @transform_2, window_bounds = array<i64: 64, 192>}, {pipeline_mode = #tpu.pipeline_mode<synchronous>, transform_indices = @transform_3, window_bounds = array<i64: 1, 192>}, {transform_indices = @transform_4, window_bounds = array<i64: 1, 8, 16, 8>}, {transform_indices = @transform_5, window_bounds = array<i64: 1, 8, 16, 8>}, {transform_indices = @transform_6, window_bounds = array<i64: 1, 8, 16, 8>}]} {
    %c0 = arith.constant 0 : index
    %c0_0 = arith.constant 0 : index
    %c0_1 = arith.constant 0 : index
    %0 = vector.load %arg2[%c0, %c0_0, %c0_1] : memref<1x16x64xf32, #tpu.memory_space<vmem>>, vector<1x16x64xf32>
    %1 = vector.shape_cast %0 : vector<1x16x64xf32> to vector<16x64xf32>
    %c0_2 = arith.constant 0 : index
    %c0_3 = arith.constant 0 : index
    %c0_4 = arith.constant 0 : index
    %2 = vector.load %arg3[%c0_2, %c0_3, %c0_4] : memref<1x6x64xf32, #tpu.memory_space<vmem>>, vector<1x6x64xf32>
    %3 = vector.shape_cast %2 : vector<1x6x64xf32> to vector<6x64xf32>
    %4 = vector.extract_strided_slice %3 {offsets = [0, 0], sizes = [1, 64], strides = [1, 1]} : vector<6x64xf32> to vector<1x64xf32>
    %5 = vector.extract_strided_slice %3 {offsets = [1, 0], sizes = [1, 64], strides = [1, 1]} : vector<6x64xf32> to vector<1x64xf32>
    %cst = arith.constant dense<0.000000e+00> : vector<16xf32>
    %6 = vector.multi_reduction <add>, %1, %cst [1] : vector<16x64xf32> to vector<16xf32>
    %7 = vector.shape_cast %6 : vector<16xf32> to vector<16x1xf32>
    %cst_5 = arith.constant 6.400000e+01 : f32
    %8 = vector.broadcast %cst_5 : f32 to vector<16x1xf32>
    %9 = arith.divf %7, %8 : vector<16x1xf32>
    %10 = arith.mulf %1, %1 : vector<16x64xf32>
    %cst_6 = arith.constant dense<0.000000e+00> : vector<16xf32>
    %11 = vector.multi_reduction <add>, %10, %cst_6 [1] : vector<16x64xf32> to vector<16xf32>
    %12 = vector.shape_cast %11 : vector<16xf32> to vector<16x1xf32>
    %cst_7 = arith.constant 6.400000e+01 : f32
    %13 = vector.broadcast %cst_7 : f32 to vector<16x1xf32>
    %14 = arith.divf %12, %13 : vector<16x1xf32>
    %15 = arith.mulf %9, %9 : vector<16x1xf32>
    %16 = arith.subf %14, %15 : vector<16x1xf32>
    %cst_8 = arith.constant 0.000000e+00 : f32
    %17 = vector.broadcast %cst_8 : f32 to vector<16x1xf32>
    %18 = arith.maximumf %16, %17 : vector<16x1xf32>
    %19 = vector.broadcast %9 : vector<16x1xf32> to vector<16x64xf32>
    %20 = arith.subf %1, %19 : vector<16x64xf32>
    %cst_9 = arith.constant 9.99999974E-6 : f32
    %21 = vector.broadcast %cst_9 : f32 to vector<16x1xf32>
    %22 = arith.addf %18, %21 : vector<16x1xf32>
    %23 = math.rsqrt %22 : vector<16x1xf32>
    %24 = vector.broadcast %23 : vector<16x1xf32> to vector<16x64xf32>
    %25 = arith.mulf %20, %24 : vector<16x64xf32>
    %26 = vector.broadcast %5 : vector<1x64xf32> to vector<16x64xf32>
    %27 = arith.mulf %25, %26 : vector<16x64xf32>
    %28 = vector.broadcast %4 : vector<1x64xf32> to vector<16x64xf32>
    %29 = arith.addf %27, %28 : vector<16x64xf32>
    %30 = arith.truncf %29 : vector<16x64xf32> to vector<16x64xbf16>
    %c0_10 = arith.constant 0 : index
    %c0_11 = arith.constant 0 : index
    %31 = vector.load %arg4[%c0_10, %c0_11] : memref<64x192xbf16, #tpu.memory_space<vmem>>, vector<64x192xbf16>
    %cst_12 = arith.constant dense<0.000000e+00> : vector<16x192xf32>
    %32 = tpu.matmul %30, %31, %cst_12 {dimension_numbers = #tpu.dot_dimension_numbers<[1], [0], [0], [1], [0, 0, 1, 1], [], []>} : vector<16x64xbf16>, vector<64x192xbf16>, vector<16x192xf32> -> vector<16x192xf32>
    %c0_13 = arith.constant 0 : index
    %c0_14 = arith.constant 0 : index
    %33 = vector.load %arg5[%c0_13, %c0_14] : memref<1x192xf32, #tpu.memory_space<vmem>>, vector<1x192xf32>
    %34 = vector.broadcast %33 : vector<1x192xf32> to vector<16x192xf32>
    %35 = arith.addf %32, %34 : vector<16x192xf32>
    %36 = vector.extract_strided_slice %35 {offsets = [0, 0], sizes = [16, 8], strides = [1, 1]} : vector<16x192xf32> to vector<16x8xf32>
    %37 = arith.truncf %36 : vector<16x8xf32> to vector<16x8xbf16>
    %c0_15 = arith.constant 0 : index
    %c0_16 = arith.constant 0 : index
    %c0_17 = arith.constant 0 : index
    %c0_18 = arith.constant 0 : index
    %38 = vector.load %arg6[%c0_15, %c0_16, %c0_17, %c0_18] : memref<1x8x16x8xbf16, #tpu.memory_space<vmem>>, vector<1x1x16x8xbf16>
    %39 = vector.shape_cast %38 : vector<1x1x16x8xbf16> to vector<16x8xbf16>
    %40 = vector.shape_cast %37 : vector<16x8xbf16> to vector<1x1x16x8xbf16>
    tpu.vector_store %arg6[%c0_15, %c0_16, %c0_17, %c0_18], %40 {strides = array<i32>} : memref<1x8x16x8xbf16, #tpu.memory_space<vmem>>, vector<1x1x16x8xbf16>,
    %41 = vector.extract_strided_slice %35 {offsets = [0, 64], sizes = [16, 8], strides = [1, 1]} : vector<16x192xf32> to vector<16x8xf32>
    %42 = arith.truncf %41 : vector<16x8xf32> to vector<16x8xbf16>
    %c0_19 = arith.constant 0 : index
    %c0_20 = arith.constant 0 : index
    %c0_21 = arith.constant 0 : index
    %c0_22 = arith.constant 0 : index
    %43 = vector.load %arg7[%c0_19, %c0_20, %c0_21, %c0_22] : memref<1x8x16x8xbf16, #tpu.memory_space<vmem>>, vector<1x1x16x8xbf16>
    %44 = vector.shape_cast %43 : vector<1x1x16x8xbf16> to vector<16x8xbf16>
    %45 = vector.shape_cast %42 : vector<16x8xbf16> to vector<1x1x16x8xbf16>
    tpu.vector_store %arg7[%c0_19, %c0_20, %c0_21, %c0_22], %45 {strides = array<i32>} : memref<1x8x16x8xbf16, #tpu.memory_space<vmem>>, vector<1x1x16x8xbf16>,
    %46 = vector.extract_strided_slice %35 {offsets = [0, 128], sizes = [16, 8], strides = [1, 1]} : vector<16x192xf32> to vector<16x8xf32>
    %47 = arith.truncf %46 : vector<16x8xf32> to vector<16x8xbf16>
    %c0_23 = arith.constant 0 : index
    %c0_24 = arith.constant 0 : index
    %c0_25 = arith.constant 0 : index
    %c0_26 = arith.constant 0 : index
    %48 = vector.load %arg8[%c0_23, %c0_24, %c0_25, %c0_26] : memref<1x8x16x8xbf16, #tpu.memory_space<vmem>>, vector<1x1x16x8xbf16>
    %49 = vector.shape_cast %48 : vector<1x1x16x8xbf16> to vector<16x8xbf16>
    %50 = vector.shape_cast %47 : vector<16x8xbf16> to vector<1x1x16x8xbf16>
    tpu.vector_store %arg8[%c0_23, %c0_24, %c0_25, %c0_26], %50 {strides = array<i32>} : memref<1x8x16x8xbf16, #tpu.memory_space<vmem>>, vector<1x1x16x8xbf16>,
    %51 = vector.extract_strided_slice %35 {offsets = [0, 8], sizes = [16, 8], strides = [1, 1]} : vector<16x192xf32> to vector<16x8xf32>
    %52 = arith.truncf %51 : vector<16x8xf32> to vector<16x8xbf16>
    %c0_27 = arith.constant 0 : index
    %c1 = arith.constant 1 : index
    %c0_28 = arith.constant 0 : index
    %c0_29 = arith.constant 0 : index
    %53 = vector.load %arg6[%c0_27, %c1, %c0_28, %c0_29] : memref<1x8x16x8xbf16, #tpu.memory_space<vmem>>, vector<1x1x16x8xbf16>
    %54 = vector.shape_cast %53 : vector<1x1x16x8xbf16> to vector<16x8xbf16>
    %55 = vector.shape_cast %52 : vector<16x8xbf16> to vector<1x1x16x8xbf16>
    tpu.vector_store %arg6[%c0_27, %c1, %c0_28, %c0_29], %55 {strides = array<i32>} : memref<1x8x16x8xbf16, #tpu.memory_space<vmem>>, vector<1x1x16x8xbf16>,
    %56 = vector.extract_strided_slice %35 {offsets = [0, 72], sizes = [16, 8], strides = [1, 1]} : vector<16x192xf32> to vector<16x8xf32>
    %57 = arith.truncf %56 : vector<16x8xf32> to vector<16x8xbf16>
    %c0_30 = arith.constant 0 : index
    %c1_31 = arith.constant 1 : index
    %c0_32 = arith.constant 0 : index
    %c0_33 = arith.constant 0 : index
    %58 = vector.load %arg7[%c0_30, %c1_31, %c0_32, %c0_33] : memref<1x8x16x8xbf16, #tpu.memory_space<vmem>>, vector<1x1x16x8xbf16>
    %59 = vector.shape_cast %58 : vector<1x1x16x8xbf16> to vector<16x8xbf16>
    %60 = vector.shape_cast %57 : vector<16x8xbf16> to vector<1x1x16x8xbf16>
    tpu.vector_store %arg7[%c0_30, %c1_31, %c0_32, %c0_33], %60 {strides = array<i32>} : memref<1x8x16x8xbf16, #tpu.memory_space<vmem>>, vector<1x1x16x8xbf16>,
    %61 = vector.extract_strided_slice %35 {offsets = [0, 136], sizes = [16, 8], strides = [1, 1]} : vector<16x192xf32> to vector<16x8xf32>
    %62 = arith.truncf %61 : vector<16x8xf32> to vector<16x8xbf16>
    %c0_34 = arith.constant 0 : index
    %c1_35 = arith.constant 1 : index
    %c0_36 = arith.constant 0 : index
    %c0_37 = arith.constant 0 : index
    %63 = vector.load %arg8[%c0_34, %c1_35, %c0_36, %c0_37] : memref<1x8x16x8xbf16, #tpu.memory_space<vmem>>, vector<1x1x16x8xbf16>
    %64 = vector.shape_cast %63 : vector<1x1x16x8xbf16> to vector<16x8xbf16>
    %65 = vector.shape_cast %62 : vector<16x8xbf16> to vector<1x1x16x8xbf16>
    tpu.vector_store %arg8[%c0_34, %c1_35, %c0_36, %c0_37], %65 {strides = array<i32>} : memref<1x8x16x8xbf16, #tpu.memory_space<vmem>>, vector<1x1x16x8xbf16>,
    %66 = vector.extract_strided_slice %35 {offsets = [0, 16], sizes = [16, 8], strides = [1, 1]} : vector<16x192xf32> to vector<16x8xf32>
    %67 = arith.truncf %66 : vector<16x8xf32> to vector<16x8xbf16>
    %c0_38 = arith.constant 0 : index
    %c2 = arith.constant 2 : index
    %c0_39 = arith.constant 0 : index
    %c0_40 = arith.constant 0 : index
    %68 = vector.load %arg6[%c0_38, %c2, %c0_39, %c0_40] : memref<1x8x16x8xbf16, #tpu.memory_space<vmem>>, vector<1x1x16x8xbf16>
    %69 = vector.shape_cast %68 : vector<1x1x16x8xbf16> to vector<16x8xbf16>
    %70 = vector.shape_cast %67 : vector<16x8xbf16> to vector<1x1x16x8xbf16>
    tpu.vector_store %arg6[%c0_38, %c2, %c0_39, %c0_40], %70 {strides = array<i32>} : memref<1x8x16x8xbf16, #tpu.memory_space<vmem>>, vector<1x1x16x8xbf16>,
    %71 = vector.extract_strided_slice %35 {offsets = [0, 80], sizes = [16, 8], strides = [1, 1]} : vector<16x192xf32> to vector<16x8xf32>
    %72 = arith.truncf %71 : vector<16x8xf32> to vector<16x8xbf16>
    %c0_41 = arith.constant 0 : index
    %c2_42 = arith.constant 2 : index
    %c0_43 = arith.constant 0 : index
    %c0_44 = arith.constant 0 : index
    %73 = vector.load %arg7[%c0_41, %c2_42, %c0_43, %c0_44] : memref<1x8x16x8xbf16, #tpu.memory_space<vmem>>, vector<1x1x16x8xbf16>
    %74 = vector.shape_cast %73 : vector<1x1x16x8xbf16> to vector<16x8xbf16>
    %75 = vector.shape_cast %72 : vector<16x8xbf16> to vector<1x1x16x8xbf16>
    tpu.vector_store %arg7[%c0_41, %c2_42, %c0_43, %c0_44], %75 {strides = array<i32>} : memref<1x8x16x8xbf16, #tpu.memory_space<vmem>>, vector<1x1x16x8xbf16>,
    %76 = vector.extract_strided_slice %35 {offsets = [0, 144], sizes = [16, 8], strides = [1, 1]} : vector<16x192xf32> to vector<16x8xf32>
    %77 = arith.truncf %76 : vector<16x8xf32> to vector<16x8xbf16>
    %c0_45 = arith.constant 0 : index
    %c2_46 = arith.constant 2 : index
    %c0_47 = arith.constant 0 : index
    %c0_48 = arith.constant 0 : index
    %78 = vector.load %arg8[%c0_45, %c2_46, %c0_47, %c0_48] : memref<1x8x16x8xbf16, #tpu.memory_space<vmem>>, vector<1x1x16x8xbf16>
    %79 = vector.shape_cast %78 : vector<1x1x16x8xbf16> to vector<16x8xbf16>
    %80 = vector.shape_cast %77 : vector<16x8xbf16> to vector<1x1x16x8xbf16>
    tpu.vector_store %arg8[%c0_45, %c2_46, %c0_47, %c0_48], %80 {strides = array<i32>} : memref<1x8x16x8xbf16, #tpu.memory_space<vmem>>, vector<1x1x16x8xbf16>,
    %81 = vector.extract_strided_slice %35 {offsets = [0, 24], sizes = [16, 8], strides = [1, 1]} : vector<16x192xf32> to vector<16x8xf32>
    %82 = arith.truncf %81 : vector<16x8xf32> to vector<16x8xbf16>
    %c0_49 = arith.constant 0 : index
    %c3 = arith.constant 3 : index
    %c0_50 = arith.constant 0 : index
    %c0_51 = arith.constant 0 : index
    %83 = vector.load %arg6[%c0_49, %c3, %c0_50, %c0_51] : memref<1x8x16x8xbf16, #tpu.memory_space<vmem>>, vector<1x1x16x8xbf16>
    %84 = vector.shape_cast %83 : vector<1x1x16x8xbf16> to vector<16x8xbf16>
    %85 = vector.shape_cast %82 : vector<16x8xbf16> to vector<1x1x16x8xbf16>
    tpu.vector_store %arg6[%c0_49, %c3, %c0_50, %c0_51], %85 {strides = array<i32>} : memref<1x8x16x8xbf16, #tpu.memory_space<vmem>>, vector<1x1x16x8xbf16>,
    %86 = vector.extract_strided_slice %35 {offsets = [0, 88], sizes = [16, 8], strides = [1, 1]} : vector<16x192xf32> to vector<16x8xf32>
    %87 = arith.truncf %86 : vector<16x8xf32> to vector<16x8xbf16>
    %c0_52 = arith.constant 0 : index
    %c3_53 = arith.constant 3 : index
    %c0_54 = arith.constant 0 : index
    %c0_55 = arith.constant 0 : index
    %88 = vector.load %arg7[%c0_52, %c3_53, %c0_54, %c0_55] : memref<1x8x16x8xbf16, #tpu.memory_space<vmem>>, vector<1x1x16x8xbf16>
    %89 = vector.shape_cast %88 : vector<1x1x16x8xbf16> to vector<16x8xbf16>
    %90 = vector.shape_cast %87 : vector<16x8xbf16> to vector<1x1x16x8xbf16>
    tpu.vector_store %arg7[%c0_52, %c3_53, %c0_54, %c0_55], %90 {strides = array<i32>} : memref<1x8x16x8xbf16, #tpu.memory_space<vmem>>, vector<1x1x16x8xbf16>,
    %91 = vector.extract_strided_slice %35 {offsets = [0, 152], sizes = [16, 8], strides = [1, 1]} : vector<16x192xf32> to vector<16x8xf32>
    %92 = arith.truncf %91 : vector<16x8xf32> to vector<16x8xbf16>
    %c0_56 = arith.constant 0 : index
    %c3_57 = arith.constant 3 : index
    %c0_58 = arith.constant 0 : index
    %c0_59 = arith.constant 0 : index
    %93 = vector.load %arg8[%c0_56, %c3_57, %c0_58, %c0_59] : memref<1x8x16x8xbf16, #tpu.memory_space<vmem>>, vector<1x1x16x8xbf16>
    %94 = vector.shape_cast %93 : vector<1x1x16x8xbf16> to vector<16x8xbf16>
    %95 = vector.shape_cast %92 : vector<16x8xbf16> to vector<1x1x16x8xbf16>
    tpu.vector_store %arg8[%c0_56, %c3_57, %c0_58, %c0_59], %95 {strides = array<i32>} : memref<1x8x16x8xbf16, #tpu.memory_space<vmem>>, vector<1x1x16x8xbf16>,
    %96 = vector.extract_strided_slice %35 {offsets = [0, 32], sizes = [16, 8], strides = [1, 1]} : vector<16x192xf32> to vector<16x8xf32>
    %97 = arith.truncf %96 : vector<16x8xf32> to vector<16x8xbf16>
    %c0_60 = arith.constant 0 : index
    %c4 = arith.constant 4 : index
    %c0_61 = arith.constant 0 : index
    %c0_62 = arith.constant 0 : index
    %98 = vector.load %arg6[%c0_60, %c4, %c0_61, %c0_62] : memref<1x8x16x8xbf16, #tpu.memory_space<vmem>>, vector<1x1x16x8xbf16>
    %99 = vector.shape_cast %98 : vector<1x1x16x8xbf16> to vector<16x8xbf16>
    %100 = vector.shape_cast %97 : vector<16x8xbf16> to vector<1x1x16x8xbf16>
    tpu.vector_store %arg6[%c0_60, %c4, %c0_61, %c0_62], %100 {strides = array<i32>} : memref<1x8x16x8xbf16, #tpu.memory_space<vmem>>, vector<1x1x16x8xbf16>,
    %101 = vector.extract_strided_slice %35 {offsets = [0, 96], sizes = [16, 8], strides = [1, 1]} : vector<16x192xf32> to vector<16x8xf32>
    %102 = arith.truncf %101 : vector<16x8xf32> to vector<16x8xbf16>
    %c0_63 = arith.constant 0 : index
    %c4_64 = arith.constant 4 : index
    %c0_65 = arith.constant 0 : index
    %c0_66 = arith.constant 0 : index
    %103 = vector.load %arg7[%c0_63, %c4_64, %c0_65, %c0_66] : memref<1x8x16x8xbf16, #tpu.memory_space<vmem>>, vector<1x1x16x8xbf16>
    %104 = vector.shape_cast %103 : vector<1x1x16x8xbf16> to vector<16x8xbf16>
    %105 = vector.shape_cast %102 : vector<16x8xbf16> to vector<1x1x16x8xbf16>
    tpu.vector_store %arg7[%c0_63, %c4_64, %c0_65, %c0_66], %105 {strides = array<i32>} : memref<1x8x16x8xbf16, #tpu.memory_space<vmem>>, vector<1x1x16x8xbf16>,
    %106 = vector.extract_strided_slice %35 {offsets = [0, 160], sizes = [16, 8], strides = [1, 1]} : vector<16x192xf32> to vector<16x8xf32>
    %107 = arith.truncf %106 : vector<16x8xf32> to vector<16x8xbf16>
    %c0_67 = arith.constant 0 : index
    %c4_68 = arith.constant 4 : index
    %c0_69 = arith.constant 0 : index
    %c0_70 = arith.constant 0 : index
    %108 = vector.load %arg8[%c0_67, %c4_68, %c0_69, %c0_70] : memref<1x8x16x8xbf16, #tpu.memory_space<vmem>>, vector<1x1x16x8xbf16>
    %109 = vector.shape_cast %108 : vector<1x1x16x8xbf16> to vector<16x8xbf16>
    %110 = vector.shape_cast %107 : vector<16x8xbf16> to vector<1x1x16x8xbf16>
    tpu.vector_store %arg8[%c0_67, %c4_68, %c0_69, %c0_70], %110 {strides = array<i32>} : memref<1x8x16x8xbf16, #tpu.memory_space<vmem>>, vector<1x1x16x8xbf16>,
    %111 = vector.extract_strided_slice %35 {offsets = [0, 40], sizes = [16, 8], strides = [1, 1]} : vector<16x192xf32> to vector<16x8xf32>
    %112 = arith.truncf %111 : vector<16x8xf32> to vector<16x8xbf16>
    %c0_71 = arith.constant 0 : index
    %c5 = arith.constant 5 : index
    %c0_72 = arith.constant 0 : index
    %c0_73 = arith.constant 0 : index
    %113 = vector.load %arg6[%c0_71, %c5, %c0_72, %c0_73] : memref<1x8x16x8xbf16, #tpu.memory_space<vmem>>, vector<1x1x16x8xbf16>
    %114 = vector.shape_cast %113 : vector<1x1x16x8xbf16> to vector<16x8xbf16>
    %115 = vector.shape_cast %112 : vector<16x8xbf16> to vector<1x1x16x8xbf16>
    tpu.vector_store %arg6[%c0_71, %c5, %c0_72, %c0_73], %115 {strides = array<i32>} : memref<1x8x16x8xbf16, #tpu.memory_space<vmem>>, vector<1x1x16x8xbf16>,
    %116 = vector.extract_strided_slice %35 {offsets = [0, 104], sizes = [16, 8], strides = [1, 1]} : vector<16x192xf32> to vector<16x8xf32>
    %117 = arith.truncf %116 : vector<16x8xf32> to vector<16x8xbf16>
    %c0_74 = arith.constant 0 : index
    %c5_75 = arith.constant 5 : index
    %c0_76 = arith.constant 0 : index
    %c0_77 = arith.constant 0 : index
    %118 = vector.load %arg7[%c0_74, %c5_75, %c0_76, %c0_77] : memref<1x8x16x8xbf16, #tpu.memory_space<vmem>>, vector<1x1x16x8xbf16>
    %119 = vector.shape_cast %118 : vector<1x1x16x8xbf16> to vector<16x8xbf16>
    %120 = vector.shape_cast %117 : vector<16x8xbf16> to vector<1x1x16x8xbf16>
    tpu.vector_store %arg7[%c0_74, %c5_75, %c0_76, %c0_77], %120 {strides = array<i32>} : memref<1x8x16x8xbf16, #tpu.memory_space<vmem>>, vector<1x1x16x8xbf16>,
    %121 = vector.extract_strided_slice %35 {offsets = [0, 168], sizes = [16, 8], strides = [1, 1]} : vector<16x192xf32> to vector<16x8xf32>
    %122 = arith.truncf %121 : vector<16x8xf32> to vector<16x8xbf16>
    %c0_78 = arith.constant 0 : index
    %c5_79 = arith.constant 5 : index
    %c0_80 = arith.constant 0 : index
    %c0_81 = arith.constant 0 : index
    %123 = vector.load %arg8[%c0_78, %c5_79, %c0_80, %c0_81] : memref<1x8x16x8xbf16, #tpu.memory_space<vmem>>, vector<1x1x16x8xbf16>
    %124 = vector.shape_cast %123 : vector<1x1x16x8xbf16> to vector<16x8xbf16>
    %125 = vector.shape_cast %122 : vector<16x8xbf16> to vector<1x1x16x8xbf16>
    tpu.vector_store %arg8[%c0_78, %c5_79, %c0_80, %c0_81], %125 {strides = array<i32>} : memref<1x8x16x8xbf16, #tpu.memory_space<vmem>>, vector<1x1x16x8xbf16>,
    %126 = vector.extract_strided_slice %35 {offsets = [0, 48], sizes = [16, 8], strides = [1, 1]} : vector<16x192xf32> to vector<16x8xf32>
    %127 = arith.truncf %126 : vector<16x8xf32> to vector<16x8xbf16>
    %c0_82 = arith.constant 0 : index
    %c6 = arith.constant 6 : index
    %c0_83 = arith.constant 0 : index
    %c0_84 = arith.constant 0 : index
    %128 = vector.load %arg6[%c0_82, %c6, %c0_83, %c0_84] : memref<1x8x16x8xbf16, #tpu.memory_space<vmem>>, vector<1x1x16x8xbf16>
    %129 = vector.shape_cast %128 : vector<1x1x16x8xbf16> to vector<16x8xbf16>
    %130 = vector.shape_cast %127 : vector<16x8xbf16> to vector<1x1x16x8xbf16>
    tpu.vector_store %arg6[%c0_82, %c6, %c0_83, %c0_84], %130 {strides = array<i32>} : memref<1x8x16x8xbf16, #tpu.memory_space<vmem>>, vector<1x1x16x8xbf16>,
    %131 = vector.extract_strided_slice %35 {offsets = [0, 112], sizes = [16, 8], strides = [1, 1]} : vector<16x192xf32> to vector<16x8xf32>
    %132 = arith.truncf %131 : vector<16x8xf32> to vector<16x8xbf16>
    %c0_85 = arith.constant 0 : index
    %c6_86 = arith.constant 6 : index
    %c0_87 = arith.constant 0 : index
    %c0_88 = arith.constant 0 : index
    %133 = vector.load %arg7[%c0_85, %c6_86, %c0_87, %c0_88] : memref<1x8x16x8xbf16, #tpu.memory_space<vmem>>, vector<1x1x16x8xbf16>
    %134 = vector.shape_cast %133 : vector<1x1x16x8xbf16> to vector<16x8xbf16>
    %135 = vector.shape_cast %132 : vector<16x8xbf16> to vector<1x1x16x8xbf16>
    tpu.vector_store %arg7[%c0_85, %c6_86, %c0_87, %c0_88], %135 {strides = array<i32>} : memref<1x8x16x8xbf16, #tpu.memory_space<vmem>>, vector<1x1x16x8xbf16>,
    %136 = vector.extract_strided_slice %35 {offsets = [0, 176], sizes = [16, 8], strides = [1, 1]} : vector<16x192xf32> to vector<16x8xf32>
    %137 = arith.truncf %136 : vector<16x8xf32> to vector<16x8xbf16>
    %c0_89 = arith.constant 0 : index
    %c6_90 = arith.constant 6 : index
    %c0_91 = arith.constant 0 : index
    %c0_92 = arith.constant 0 : index
    %138 = vector.load %arg8[%c0_89, %c6_90, %c0_91, %c0_92] : memref<1x8x16x8xbf16, #tpu.memory_space<vmem>>, vector<1x1x16x8xbf16>
    %139 = vector.shape_cast %138 : vector<1x1x16x8xbf16> to vector<16x8xbf16>
    %140 = vector.shape_cast %137 : vector<16x8xbf16> to vector<1x1x16x8xbf16>
    tpu.vector_store %arg8[%c0_89, %c6_90, %c0_91, %c0_92], %140 {strides = array<i32>} : memref<1x8x16x8xbf16, #tpu.memory_space<vmem>>, vector<1x1x16x8xbf16>,
    %141 = vector.extract_strided_slice %35 {offsets = [0, 56], sizes = [16, 8], strides = [1, 1]} : vector<16x192xf32> to vector<16x8xf32>
    %142 = arith.truncf %141 : vector<16x8xf32> to vector<16x8xbf16>
    %c0_93 = arith.constant 0 : index
    %c7 = arith.constant 7 : index
    %c0_94 = arith.constant 0 : index
    %c0_95 = arith.constant 0 : index
    %143 = vector.load %arg6[%c0_93, %c7, %c0_94, %c0_95] : memref<1x8x16x8xbf16, #tpu.memory_space<vmem>>, vector<1x1x16x8xbf16>
    %144 = vector.shape_cast %143 : vector<1x1x16x8xbf16> to vector<16x8xbf16>
    %145 = vector.shape_cast %142 : vector<16x8xbf16> to vector<1x1x16x8xbf16>
    tpu.vector_store %arg6[%c0_93, %c7, %c0_94, %c0_95], %145 {strides = array<i32>} : memref<1x8x16x8xbf16, #tpu.memory_space<vmem>>, vector<1x1x16x8xbf16>,
    %146 = vector.extract_strided_slice %35 {offsets = [0, 120], sizes = [16, 8], strides = [1, 1]} : vector<16x192xf32> to vector<16x8xf32>
    %147 = arith.truncf %146 : vector<16x8xf32> to vector<16x8xbf16>
    %c0_96 = arith.constant 0 : index
    %c7_97 = arith.constant 7 : index
    %c0_98 = arith.constant 0 : index
    %c0_99 = arith.constant 0 : index
    %148 = vector.load %arg7[%c0_96, %c7_97, %c0_98, %c0_99] : memref<1x8x16x8xbf16, #tpu.memory_space<vmem>>, vector<1x1x16x8xbf16>
    %149 = vector.shape_cast %148 : vector<1x1x16x8xbf16> to vector<16x8xbf16>
    %150 = vector.shape_cast %147 : vector<16x8xbf16> to vector<1x1x16x8xbf16>
    tpu.vector_store %arg7[%c0_96, %c7_97, %c0_98, %c0_99], %150 {strides = array<i32>} : memref<1x8x16x8xbf16, #tpu.memory_space<vmem>>, vector<1x1x16x8xbf16>,
    %151 = vector.extract_strided_slice %35 {offsets = [0, 184], sizes = [16, 8], strides = [1, 1]} : vector<16x192xf32> to vector<16x8xf32>
    %152 = arith.truncf %151 : vector<16x8xf32> to vector<16x8xbf16>
    %c0_100 = arith.constant 0 : index
    %c7_101 = arith.constant 7 : index
    %c0_102 = arith.constant 0 : index
    %c0_103 = arith.constant 0 : index
    %153 = vector.load %arg8[%c0_100, %c7_101, %c0_102, %c0_103] : memref<1x8x16x8xbf16, #tpu.memory_space<vmem>>, vector<1x1x16x8xbf16>
    %154 = vector.shape_cast %153 : vector<1x1x16x8xbf16> to vector<16x8xbf16>
    %155 = vector.shape_cast %152 : vector<16x8xbf16> to vector<1x1x16x8xbf16>
    tpu.vector_store %arg8[%c0_100, %c7_101, %c0_102, %c0_103], %155 {strides = array<i32>} : memref<1x8x16x8xbf16, #tpu.memory_space<vmem>>, vector<1x1x16x8xbf16>,
    return
  }
  func.func @transform_0(%arg0: i32, %arg1: i32) -> (i32, i32, i32) {
    %c0_i32 = arith.constant 0 : i32
    %c0_i32_0 = arith.constant 0 : i32
    return %arg0, %arg1, %c0_i32 : i32, i32, i32
  }
  func.func @transform_1(%arg0: i32, %arg1: i32) -> (i32, i32, i32) {
    %c0_i32 = arith.constant 0 : i32
    %c0_i32_0 = arith.constant 0 : i32
    %c0_i32_1 = arith.constant 0 : i32
    return %arg0, %c0_i32, %c0_i32_0 : i32, i32, i32
  }
  func.func @transform_2(%arg0: i32, %arg1: i32) -> (i32, i32) {
    %c0_i32 = arith.constant 0 : i32
    %c0_i32_0 = arith.constant 0 : i32
    %c0_i32_1 = arith.constant 0 : i32
    return %c0_i32, %c0_i32_0 : i32, i32
  }
  func.func @transform_3(%arg0: i32, %arg1: i32) -> (i32, i32) {
    %c0_i32 = arith.constant 0 : i32
    %c0_i32_0 = arith.constant 0 : i32
    %c0_i32_1 = arith.constant 0 : i32
    return %c0_i32, %c0_i32_0 : i32, i32
  }
  func.func @transform_4(%arg0: i32, %arg1: i32) -> (i32, i32, i32, i32) {
    %c0_i32 = arith.constant 0 : i32
    %c0_i32_0 = arith.constant 0 : i32
    %c0_i32_1 = arith.constant 0 : i32
    return %arg0, %c0_i32, %arg1, %c0_i32_0 : i32, i32, i32, i32
  }
  func.func @transform_5(%arg0: i32, %arg1: i32) -> (i32, i32, i32, i32) {
    %c0_i32 = arith.constant 0 : i32
    %c0_i32_0 = arith.constant 0 : i32
    %c0_i32_1 = arith.constant 0 : i32
    return %arg0, %c0_i32, %arg1, %c0_i32_0 : i32, i32, i32, i32
  }
  func.func @transform_6(%arg0: i32, %arg1: i32) -> (i32, i32, i32, i32) {
    %c0_i32 = arith.constant 0 : i32
    %c0_i32_0 = arith.constant 0 : i32
    %c0_i32_1 = arith.constant 0 : i32
    return %arg0, %c0_i32, %arg1, %c0_i32_0 : i32, i32, i32, i32
  }
}

module attributes {stable_mosaic.version = 11 : i64} {
  func.func @_qkv_kernel(%arg0: i32, %arg1: i32, %arg2: memref<1x16x64xf32, #tpu.memory_space<vmem>>, %arg3: memref<1x6x64xf32, #tpu.memory_space<vmem>>, %arg4: memref<64x192xbf16, #tpu.memory_space<vmem>>, %arg5: memref<1x192xf32, #tpu.memory_space<vmem>>, %arg6: memref<1x8x16x8xbf16, #tpu.memory_space<vmem>>, %arg7: memref<1x8x16x8xbf16, #tpu.memory_space<vmem>>, %arg8: memref<1x8x16x8xbf16, #tpu.memory_space<vmem>>) attributes {dimension_semantics = [#tpu.dimension_semantics<parallel>, #tpu.dimension_semantics<parallel>], iteration_bounds = array<i64: 2, 1>, scalar_prefetch = 0 : i64, scratch_operands = 0 : i64, tpu.core_type = #tpu.core_type<tc>, window_params = [{transform_indices = @transform_0, window_bounds = array<i64: 1, 16, 64>}, {transform_indices = @transform_1, window_bounds = array<i64: 1, 6, 64>}, {pipeline_mode = #tpu.pipeline_mode<synchronous>, transform_indices = @transform_2, window_bounds = array<i64: 64, 192>}, {pipeline_mode = #tpu.pipeline_mode<synchronous>, transform_indices = @transform_3, window_bounds = array<i64: 1, 192>}, {transform_indices = @transform_4, window_bounds = array<i64: 1, 8, 16, 8>}, {transform_indices = @transform_5, window_bounds = array<i64: 1, 8, 16, 8>}, {transform_indices = @transform_6, window_bounds = array<i64: 1, 8, 16, 8>}]} {
    %c0 = arith.constant 0 : index
    %c0_0 = arith.constant 0 : index
    %c0_1 = arith.constant 0 : index
    %0 = vector.load %arg2[%c0, %c0_0, %c0_1] : memref<1x16x64xf32, #tpu.memory_space<vmem>>, vector<1x16x64xf32>
    %1 = vector.shape_cast %0 : vector<1x16x64xf32> to vector<16x64xf32>
    %c0_2 = arith.constant 0 : index
    %c0_3 = arith.constant 0 : index
    %c0_4 = arith.constant 0 : index
    %2 = vector.load %arg3[%c0_2, %c0_3, %c0_4] : memref<1x6x64xf32, #tpu.memory_space<vmem>>, vector<1x6x64xf32>
    %3 = vector.shape_cast %2 : vector<1x6x64xf32> to vector<6x64xf32>
    %4 = vector.extract_strided_slice %3 {offsets = [0, 0], sizes = [1, 64], strides = [1, 1]} : vector<6x64xf32> to vector<1x64xf32>
    %5 = vector.extract_strided_slice %3 {offsets = [1, 0], sizes = [1, 64], strides = [1, 1]} : vector<6x64xf32> to vector<1x64xf32>
    %cst = arith.constant dense<0.000000e+00> : vector<16xf32>
    %6 = vector.multi_reduction <add>, %1, %cst [1] : vector<16x64xf32> to vector<16xf32>
    %7 = vector.shape_cast %6 : vector<16xf32> to vector<16x1xf32>
    %cst_5 = arith.constant 6.400000e+01 : f32
    %8 = vector.broadcast %cst_5 : f32 to vector<16x1xf32>
    %9 = arith.divf %7, %8 : vector<16x1xf32>
    %10 = arith.mulf %1, %1 : vector<16x64xf32>
    %cst_6 = arith.constant dense<0.000000e+00> : vector<16xf32>
    %11 = vector.multi_reduction <add>, %10, %cst_6 [1] : vector<16x64xf32> to vector<16xf32>
    %12 = vector.shape_cast %11 : vector<16xf32> to vector<16x1xf32>
    %cst_7 = arith.constant 6.400000e+01 : f32
    %13 = vector.broadcast %cst_7 : f32 to vector<16x1xf32>
    %14 = arith.divf %12, %13 : vector<16x1xf32>
    %15 = arith.mulf %9, %9 : vector<16x1xf32>
    %16 = arith.subf %14, %15 : vector<16x1xf32>
    %cst_8 = arith.constant 0.000000e+00 : f32
    %17 = vector.broadcast %cst_8 : f32 to vector<16x1xf32>
    %18 = arith.maximumf %16, %17 : vector<16x1xf32>
    %19 = vector.broadcast %9 : vector<16x1xf32> to vector<16x64xf32>
    %20 = arith.subf %1, %19 : vector<16x64xf32>
    %cst_9 = arith.constant 9.99999974E-6 : f32
    %21 = vector.broadcast %cst_9 : f32 to vector<16x1xf32>
    %22 = arith.addf %18, %21 : vector<16x1xf32>
    %23 = math.rsqrt %22 : vector<16x1xf32>
    %24 = vector.broadcast %23 : vector<16x1xf32> to vector<16x64xf32>
    %25 = arith.mulf %20, %24 : vector<16x64xf32>
    %26 = vector.broadcast %5 : vector<1x64xf32> to vector<16x64xf32>
    %27 = arith.mulf %25, %26 : vector<16x64xf32>
    %28 = vector.broadcast %4 : vector<1x64xf32> to vector<16x64xf32>
    %29 = arith.addf %27, %28 : vector<16x64xf32>
    %30 = arith.truncf %29 : vector<16x64xf32> to vector<16x64xbf16>
    %c0_10 = arith.constant 0 : index
    %c0_11 = arith.constant 0 : index
    %31 = vector.load %arg4[%c0_10, %c0_11] : memref<64x192xbf16, #tpu.memory_space<vmem>>, vector<64x192xbf16>
    %cst_12 = arith.constant dense<0.000000e+00> : vector<16x192xf32>
    %32 = tpu.matmul %30, %31, %cst_12 {dimension_numbers = #tpu.dot_dimension_numbers<[1], [0], [0], [1], [0, 0, 1, 1], [], []>} : vector<16x64xbf16>, vector<64x192xbf16>, vector<16x192xf32> -> vector<16x192xf32>
    %c0_13 = arith.constant 0 : index
    %c0_14 = arith.constant 0 : index
    %33 = vector.load %arg5[%c0_13, %c0_14] : memref<1x192xf32, #tpu.memory_space<vmem>>, vector<1x192xf32>
    %34 = vector.broadcast %33 : vector<1x192xf32> to vector<16x192xf32>
    %35 = arith.addf %32, %34 : vector<16x192xf32>
    %36 = vector.extract_strided_slice %35 {offsets = [0, 0], sizes = [16, 8], strides = [1, 1]} : vector<16x192xf32> to vector<16x8xf32>
    %37 = arith.truncf %36 : vector<16x8xf32> to vector<16x8xbf16>
    %c0_15 = arith.constant 0 : index
    %c0_16 = arith.constant 0 : index
    %c0_17 = arith.constant 0 : index
    %c0_18 = arith.constant 0 : index
    %38 = vector.load %arg6[%c0_15, %c0_16, %c0_17, %c0_18] : memref<1x8x16x8xbf16, #tpu.memory_space<vmem>>, vector<1x1x16x8xbf16>
    %39 = vector.shape_cast %38 : vector<1x1x16x8xbf16> to vector<16x8xbf16>
    %40 = vector.shape_cast %37 : vector<16x8xbf16> to vector<1x1x16x8xbf16>
    tpu.vector_store %arg6[%c0_15, %c0_16, %c0_17, %c0_18], %40 {strides = array<i32>} : memref<1x8x16x8xbf16, #tpu.memory_space<vmem>>, vector<1x1x16x8xbf16>,
    %41 = vector.extract_strided_slice %35 {offsets = [0, 64], sizes = [16, 8], strides = [1, 1]} : vector<16x192xf32> to vector<16x8xf32>
    %42 = arith.truncf %41 : vector<16x8xf32> to vector<16x8xbf16>
    %c0_19 = arith.constant 0 : index
    %c0_20 = arith.constant 0 : index
    %c0_21 = arith.constant 0 : index
    %c0_22 = arith.constant 0 : index
    %43 = vector.load %arg7[%c0_19, %c0_20, %c0_21, %c0_22] : memref<1x8x16x8xbf16, #tpu.memory_space<vmem>>, vector<1x1x16x8xbf16>
    %44 = vector.shape_cast %43 : vector<1x1x16x8xbf16> to vector<16x8xbf16>
    %45 = vector.shape_cast %42 : vector<16x8xbf16> to vector<1x1x16x8xbf16>
    tpu.vector_store %arg7[%c0_19, %c0_20, %c0_21, %c0_22], %45 {strides = array<i32>} : memref<1x8x16x8xbf16, #tpu.memory_space<vmem>>, vector<1x1x16x8xbf16>,
    %46 = vector.extract_strided_slice %35 {offsets = [0, 128], sizes = [16, 8], strides = [1, 1]} : vector<16x192xf32> to vector<16x8xf32>
    %47 = arith.truncf %46 : vector<16x8xf32> to vector<16x8xbf16>
    %c0_23 = arith.constant 0 : index
    %c0_24 = arith.constant 0 : index
    %c0_25 = arith.constant 0 : index
    %c0_26 = arith.constant 0 : index
    %48 = vector.load %arg8[%c0_23, %c0_24, %c0_25, %c0_26] : memref<1x8x16x8xbf16, #tpu.memory_space<vmem>>, vector<1x1x16x8xbf16>
    %49 = vector.shape_cast %48 : vector<1x1x16x8xbf16> to vector<16x8xbf16>
    %50 = vector.shape_cast %47 : vector<16x8xbf16> to vector<1x1x16x8xbf16>
    tpu.vector_store %arg8[%c0_23, %c0_24, %c0_25, %c0_26], %50 {strides = array<i32>} : memref<1x8x16x8xbf16, #tpu.memory_space<vmem>>, vector<1x1x16x8xbf16>,
    %51 = vector.extract_strided_slice %35 {offsets = [0, 8], sizes = [16, 8], strides = [1, 1]} : vector<16x192xf32> to vector<16x8xf32>
    %52 = arith.truncf %51 : vector<16x8xf32> to vector<16x8xbf16>
    %c0_27 = arith.constant 0 : index
    %c1 = arith.constant 1 : index
    %c0_28 = arith.constant 0 : index
    %c0_29 = arith.constant 0 : index
    %53 = vector.load %arg6[%c0_27, %c1, %c0_28, %c0_29] : memref<1x8x16x8xbf16, #tpu.memory_space<vmem>>, vector<1x1x16x8xbf16>
    %54 = vector.shape_cast %53 : vector<1x1x16x8xbf16> to vector<16x8xbf16>
    %55 = vector.shape_cast %52 : vector<16x8xbf16> to vector<1x1x16x8xbf16>
    tpu.vector_store %arg6[%c0_27, %c1, %c0_28, %c0_29], %55 {strides = array<i32>} : memref<1x8x16x8xbf16, #tpu.memory_space<vmem>>, vector<1x1x16x8xbf16>,
    %56 = vector.extract_strided_slice %35 {offsets = [0, 72], sizes = [16, 8], strides = [1, 1]} : vector<16x192xf32> to vector<16x8xf32>
    %57 = arith.truncf %56 : vector<16x8xf32> to vector<16x8xbf16>
    %c0_30 = arith.constant 0 : index
    %c1_31 = arith.constant 1 : index
    %c0_32 = arith.constant 0 : index
    %c0_33 = arith.constant 0 : index
    %58 = vector.load %arg7[%c0_30, %c1_31, %c0_32, %c0_33] : memref<1x8x16x8xbf16, #tpu.memory_space<vmem>>, vector<1x1x16x8xbf16>
    %59 = vector.shape_cast %58 : vector<1x1x16x8xbf16> to vector<16x8xbf16>
    %60 = vector.shape_cast %57 : vector<16x8xbf16> to vector<1x1x16x8xbf16>
    tpu.vector_store %arg7[%c0_30, %c1_31, %c0_32, %c0_33], %60 {strides = array<i32>} : memref<1x8x16x8xbf16, #tpu.memory_space<vmem>>, vector<1x1x16x8xbf16>,
    %61 = vector.extract_strided_slice %35 {offsets = [0, 136], sizes = [16, 8], strides = [1, 1]} : vector<16x192xf32> to vector<16x8xf32>
    %62 = arith.truncf %61 : vector<16x8xf32> to vector<16x8xbf16>
    %c0_34 = arith.constant 0 : index
    %c1_35 = arith.constant 1 : index
    %c0_36 = arith.constant 0 : index
    %c0_37 = arith.constant 0 : index
    %63 = vector.load %arg8[%c0_34, %c1_35, %c0_36, %c0_37] : memref<1x8x16x8xbf16, #tpu.memory_space<vmem>>, vector<1x1x16x8xbf16>
    %64 = vector.shape_cast %63 : vector<1x1x16x8xbf16> to vector<16x8xbf16>
    %65 = vector.shape_cast %62 : vector<16x8xbf16> to vector<1x1x16x8xbf16>
    tpu.vector_store %arg8[%c0_34, %c1_35, %c0_36, %c0_37], %65 {strides = array<i32>} : memref<1x8x16x8xbf16, #tpu.memory_space<vmem>>, vector<1x1x16x8xbf16>,
    %66 = vector.extract_strided_slice %35 {offsets = [0, 16], sizes = [16, 8], strides = [1, 1]} : vector<16x192xf32> to vector<16x8xf32>
    %67 = arith.truncf %66 : vector<16x8xf32> to vector<16x8xbf16>
    %c0_38 = arith.constant 0 : index
    %c2 = arith.constant 2 : index
    %c0_39 = arith.constant 0 : index
    %c0_40 = arith.constant 0 : index
    %68 = vector.load %arg6[%c0_38, %c2, %c0_39, %c0_40] : memref<1x8x16x8xbf16, #tpu.memory_space<vmem>>, vector<1x1x16x8xbf16>
    %69 = vector.shape_cast %68 : vector<1x1x16x8xbf16> to vector<16x8xbf16>
    %70 = vector.shape_cast %67 : vector<16x8xbf16> to vector<1x1x16x8xbf16>
    tpu.vector_store %arg6[%c0_38, %c2, %c0_39, %c0_40], %70 {strides = array<i32>} : memref<1x8x16x8xbf16, #tpu.memory_space<vmem>>, vector<1x1x16x8xbf16>,
    %71 = vector.extract_strided_slice %35 {offsets = [0, 80], sizes = [16, 8], strides = [1, 1]} : vector<16x192xf32> to vector<16x8xf32>
    %72 = arith.truncf %71 : vector<16x8xf32> to vector<16x8xbf16>
    %c0_41 = arith.constant 0 : index
    %c2_42 = arith.constant 2 : index
    %c0_43 = arith.constant 0 : index
    %c0_44 = arith.constant 0 : index
    %73 = vector.load %arg7[%c0_41, %c2_42, %c0_43, %c0_44] : memref<1x8x16x8xbf16, #tpu.memory_space<vmem>>, vector<1x1x16x8xbf16>
    %74 = vector.shape_cast %73 : vector<1x1x16x8xbf16> to vector<16x8xbf16>
    %75 = vector.shape_cast %72 : vector<16x8xbf16> to vector<1x1x16x8xbf16>
    tpu.vector_store %arg7[%c0_41, %c2_42, %c0_43, %c0_44], %75 {strides = array<i32>} : memref<1x8x16x8xbf16, #tpu.memory_space<vmem>>, vector<1x1x16x8xbf16>,
    %76 = vector.extract_strided_slice %35 {offsets = [0, 144], sizes = [16, 8], strides = [1, 1]} : vector<16x192xf32> to vector<16x8xf32>
    %77 = arith.truncf %76 : vector<16x8xf32> to vector<16x8xbf16>
    %c0_45 = arith.constant 0 : index
    %c2_46 = arith.constant 2 : index
    %c0_47 = arith.constant 0 : index
    %c0_48 = arith.constant 0 : index
    %78 = vector.load %arg8[%c0_45, %c2_46, %c0_47, %c0_48] : memref<1x8x16x8xbf16, #tpu.memory_space<vmem>>, vector<1x1x16x8xbf16>
    %79 = vector.shape_cast %78 : vector<1x1x16x8xbf16> to vector<16x8xbf16>
    %80 = vector.shape_cast %77 : vector<16x8xbf16> to vector<1x1x16x8xbf16>
    tpu.vector_store %arg8[%c0_45, %c2_46, %c0_47, %c0_48], %80 {strides = array<i32>} : memref<1x8x16x8xbf16, #tpu.memory_space<vmem>>, vector<1x1x16x8xbf16>,
    %81 = vector.extract_strided_slice %35 {offsets = [0, 24], sizes = [16, 8], strides = [1, 1]} : vector<16x192xf32> to vector<16x8xf32>
    %82 = arith.truncf %81 : vector<16x8xf32> to vector<16x8xbf16>
    %c0_49 = arith.constant 0 : index
    %c3 = arith.constant 3 : index
    %c0_50 = arith.constant 0 : index
    %c0_51 = arith.constant 0 : index
    %83 = vector.load %arg6[%c0_49, %c3, %c0_50, %c0_51] : memref<1x8x16x8xbf16, #tpu.memory_space<vmem>>, vector<1x1x16x8xbf16>
    %84 = vector.shape_cast %83 : vector<1x1x16x8xbf16> to vector<16x8xbf16>
    %85 = vector.shape_cast %82 : vector<16x8xbf16> to vector<1x1x16x8xbf16>
    tpu.vector_store %arg6[%c0_49, %c3, %c0_50, %c0_51], %85 {strides = array<i32>} : memref<1x8x16x8xbf16, #tpu.memory_space<vmem>>, vector<1x1x16x8xbf16>,
    %86 = vector.extract_strided_slice %35 {offsets = [0, 88], sizes = [16, 8], strides = [1, 1]} : vector<16x192xf32> to vector<16x8xf32>
    %87 = arith.truncf %86 : vector<16x8xf32> to vector<16x8xbf16>
    %c0_52 = arith.constant 0 : index
    %c3_53 = arith.constant 3 : index
    %c0_54 = arith.constant 0 : index
    %c0_55 = arith.constant 0 : index
    %88 = vector.load %arg7[%c0_52, %c3_53, %c0_54, %c0_55] : memref<1x8x16x8xbf16, #tpu.memory_space<vmem>>, vector<1x1x16x8xbf16>
    %89 = vector.shape_cast %88 : vector<1x1x16x8xbf16> to vector<16x8xbf16>
    %90 = vector.shape_cast %87 : vector<16x8xbf16> to vector<1x1x16x8xbf16>
    tpu.vector_store %arg7[%c0_52, %c3_53, %c0_54, %c0_55], %90 {strides = array<i32>} : memref<1x8x16x8xbf16, #tpu.memory_space<vmem>>, vector<1x1x16x8xbf16>,
    %91 = vector.extract_strided_slice %35 {offsets = [0, 152], sizes = [16, 8], strides = [1, 1]} : vector<16x192xf32> to vector<16x8xf32>
    %92 = arith.truncf %91 : vector<16x8xf32> to vector<16x8xbf16>
    %c0_56 = arith.constant 0 : index
    %c3_57 = arith.constant 3 : index
    %c0_58 = arith.constant 0 : index
    %c0_59 = arith.constant 0 : index
    %93 = vector.load %arg8[%c0_56, %c3_57, %c0_58, %c0_59] : memref<1x8x16x8xbf16, #tpu.memory_space<vmem>>, vector<1x1x16x8xbf16>
    %94 = vector.shape_cast %93 : vector<1x1x16x8xbf16> to vector<16x8xbf16>
    %95 = vector.shape_cast %92 : vector<16x8xbf16> to vector<1x1x16x8xbf16>
    tpu.vector_store %arg8[%c0_56, %c3_57, %c0_58, %c0_59], %95 {strides = array<i32>} : memref<1x8x16x8xbf16, #tpu.memory_space<vmem>>, vector<1x1x16x8xbf16>,
    %96 = vector.extract_strided_slice %35 {offsets = [0, 32], sizes = [16, 8], strides = [1, 1]} : vector<16x192xf32> to vector<16x8xf32>
    %97 = arith.truncf %96 : vector<16x8xf32> to vector<16x8xbf16>
    %c0_60 = arith.constant 0 : index
    %c4 = arith.constant 4 : index
    %c0_61 = arith.constant 0 : index
    %c0_62 = arith.constant 0 : index
    %98 = vector.load %arg6[%c0_60, %c4, %c0_61, %c0_62] : memref<1x8x16x8xbf16, #tpu.memory_space<vmem>>, vector<1x1x16x8xbf16>
    %99 = vector.shape_cast %98 : vector<1x1x16x8xbf16> to vector<16x8xbf16>
    %100 = vector.shape_cast %97 : vector<16x8xbf16> to vector<1x1x16x8xbf16>
    tpu.vector_store %arg6[%c0_60, %c4, %c0_61, %c0_62], %100 {strides = array<i32>} : memref<1x8x16x8xbf16, #tpu.memory_space<vmem>>, vector<1x1x16x8xbf16>,
    %101 = vector.extract_strided_slice %35 {offsets = [0, 96], sizes = [16, 8], strides = [1, 1]} : vector<16x192xf32> to vector<16x8xf32>
    %102 = arith.truncf %101 : vector<16x8xf32> to vector<16x8xbf16>
    %c0_63 = arith.constant 0 : index
    %c4_64 = arith.constant 4 : index
    %c0_65 = arith.constant 0 : index
    %c0_66 = arith.constant 0 : index
    %103 = vector.load %arg7[%c0_63, %c4_64, %c0_65, %c0_66] : memref<1x8x16x8xbf16, #tpu.memory_space<vmem>>, vector<1x1x16x8xbf16>
    %104 = vector.shape_cast %103 : vector<1x1x16x8xbf16> to vector<16x8xbf16>
    %105 = vector.shape_cast %102 : vector<16x8xbf16> to vector<1x1x16x8xbf16>
    tpu.vector_store %arg7[%c0_63, %c4_64, %c0_65, %c0_66], %105 {strides = array<i32>} : memref<1x8x16x8xbf16, #tpu.memory_space<vmem>>, vector<1x1x16x8xbf16>,
    %106 = vector.extract_strided_slice %35 {offsets = [0, 160], sizes = [16, 8], strides = [1, 1]} : vector<16x192xf32> to vector<16x8xf32>
    %107 = arith.truncf %106 : vector<16x8xf32> to vector<16x8xbf16>
    %c0_67 = arith.constant 0 : index
    %c4_68 = arith.constant 4 : index
    %c0_69 = arith.constant 0 : index
    %c0_70 = arith.constant 0 : index
    %108 = vector.load %arg8[%c0_67, %c4_68, %c0_69, %c0_70] : memref<1x8x16x8xbf16, #tpu.memory_space<vmem>>, vector<1x1x16x8xbf16>
    %109 = vector.shape_cast %108 : vector<1x1x16x8xbf16> to vector<16x8xbf16>
    %110 = vector.shape_cast %107 : vector<16x8xbf16> to vector<1x1x16x8xbf16>
    tpu.vector_store %arg8[%c0_67, %c4_68, %c0_69, %c0_70], %110 {strides = array<i32>} : memref<1x8x16x8xbf16, #tpu.memory_space<vmem>>, vector<1x1x16x8xbf16>,
    %111 = vector.extract_strided_slice %35 {offsets = [0, 40], sizes = [16, 8], strides = [1, 1]} : vector<16x192xf32> to vector<16x8xf32>
    %112 = arith.truncf %111 : vector<16x8xf32> to vector<16x8xbf16>
    %c0_71 = arith.constant 0 : index
    %c5 = arith.constant 5 : index
    %c0_72 = arith.constant 0 : index
    %c0_73 = arith.constant 0 : index
    %113 = vector.load %arg6[%c0_71, %c5, %c0_72, %c0_73] : memref<1x8x16x8xbf16, #tpu.memory_space<vmem>>, vector<1x1x16x8xbf16>
    %114 = vector.shape_cast %113 : vector<1x1x16x8xbf16> to vector<16x8xbf16>
    %115 = vector.shape_cast %112 : vector<16x8xbf16> to vector<1x1x16x8xbf16>
    tpu.vector_store %arg6[%c0_71, %c5, %c0_72, %c0_73], %115 {strides = array<i32>} : memref<1x8x16x8xbf16, #tpu.memory_space<vmem>>, vector<1x1x16x8xbf16>,
    %116 = vector.extract_strided_slice %35 {offsets = [0, 104], sizes = [16, 8], strides = [1, 1]} : vector<16x192xf32> to vector<16x8xf32>
    %117 = arith.truncf %116 : vector<16x8xf32> to vector<16x8xbf16>
    %c0_74 = arith.constant 0 : index
    %c5_75 = arith.constant 5 : index
    %c0_76 = arith.constant 0 : index
    %c0_77 = arith.constant 0 : index
    %118 = vector.load %arg7[%c0_74, %c5_75, %c0_76, %c0_77] : memref<1x8x16x8xbf16, #tpu.memory_space<vmem>>, vector<1x1x16x8xbf16>
    %119 = vector.shape_cast %118 : vector<1x1x16x8xbf16> to vector<16x8xbf16>
    %120 = vector.shape_cast %117 : vector<16x8xbf16> to vector<1x1x16x8xbf16>
    tpu.vector_store %arg7[%c0_74, %c5_75, %c0_76, %c0_77], %120 {strides = array<i32>} : memref<1x8x16x8xbf16, #tpu.memory_space<vmem>>, vector<1x1x16x8xbf16>,
    %121 = vector.extract_strided_slice %35 {offsets = [0, 168], sizes = [16, 8], strides = [1, 1]} : vector<16x192xf32> to vector<16x8xf32>
    %122 = arith.truncf %121 : vector<16x8xf32> to vector<16x8xbf16>
    %c0_78 = arith.constant 0 : index
    %c5_79 = arith.constant 5 : index
    %c0_80 = arith.constant 0 : index
    %c0_81 = arith.constant 0 : index
    %123 = vector.load %arg8[%c0_78, %c5_79, %c0_80, %c0_81] : memref<1x8x16x8xbf16, #tpu.memory_space<vmem>>, vector<1x1x16x8xbf16>
    %124 = vector.shape_cast %123 : vector<1x1x16x8xbf16> to vector<16x8xbf16>
    %125 = vector.shape_cast %122 : vector<16x8xbf16> to vector<1x1x16x8xbf16>
    tpu.vector_store %arg8[%c0_78, %c5_79, %c0_80, %c0_81], %125 {strides = array<i32>} : memref<1x8x16x8xbf16, #tpu.memory_space<vmem>>, vector<1x1x16x8xbf16>,
    %126 = vector.extract_strided_slice %35 {offsets = [0, 48], sizes = [16, 8], strides = [1, 1]} : vector<16x192xf32> to vector<16x8xf32>
    %127 = arith.truncf %126 : vector<16x8xf32> to vector<16x8xbf16>
    %c0_82 = arith.constant 0 : index
    %c6 = arith.constant 6 : index
    %c0_83 = arith.constant 0 : index
    %c0_84 = arith.constant 0 : index
    %128 = vector.load %arg6[%c0_82, %c6, %c0_83, %c0_84] : memref<1x8x16x8xbf16, #tpu.memory_space<vmem>>, vector<1x1x16x8xbf16>
    %129 = vector.shape_cast %128 : vector<1x1x16x8xbf16> to vector<16x8xbf16>
    %130 = vector.shape_cast %127 : vector<16x8xbf16> to vector<1x1x16x8xbf16>
    tpu.vector_store %arg6[%c0_82, %c6, %c0_83, %c0_84], %130 {strides = array<i32>} : memref<1x8x16x8xbf16, #tpu.memory_space<vmem>>, vector<1x1x16x8xbf16>,
    %131 = vector.extract_strided_slice %35 {offsets = [0, 112], sizes = [16, 8], strides = [1, 1]} : vector<16x192xf32> to vector<16x8xf32>
    %132 = arith.truncf %131 : vector<16x8xf32> to vector<16x8xbf16>
    %c0_85 = arith.constant 0 : index
    %c6_86 = arith.constant 6 : index
    %c0_87 = arith.constant 0 : index
    %c0_88 = arith.constant 0 : index
    %133 = vector.load %arg7[%c0_85, %c6_86, %c0_87, %c0_88] : memref<1x8x16x8xbf16, #tpu.memory_space<vmem>>, vector<1x1x16x8xbf16>
    %134 = vector.shape_cast %133 : vector<1x1x16x8xbf16> to vector<16x8xbf16>
    %135 = vector.shape_cast %132 : vector<16x8xbf16> to vector<1x1x16x8xbf16>
    tpu.vector_store %arg7[%c0_85, %c6_86, %c0_87, %c0_88], %135 {strides = array<i32>} : memref<1x8x16x8xbf16, #tpu.memory_space<vmem>>, vector<1x1x16x8xbf16>,
    %136 = vector.extract_strided_slice %35 {offsets = [0, 176], sizes = [16, 8], strides = [1, 1]} : vector<16x192xf32> to vector<16x8xf32>
    %137 = arith.truncf %136 : vector<16x8xf32> to vector<16x8xbf16>
    %c0_89 = arith.constant 0 : index
    %c6_90 = arith.constant 6 : index
    %c0_91 = arith.constant 0 : index
    %c0_92 = arith.constant 0 : index
    %138 = vector.load %arg8[%c0_89, %c6_90, %c0_91, %c0_92] : memref<1x8x16x8xbf16, #tpu.memory_space<vmem>>, vector<1x1x16x8xbf16>
    %139 = vector.shape_cast %138 : vector<1x1x16x8xbf16> to vector<16x8xbf16>
    %140 = vector.shape_cast %137 : vector<16x8xbf16> to vector<1x1x16x8xbf16>
    tpu.vector_store %arg8[%c0_89, %c6_90, %c0_91, %c0_92], %140 {strides = array<i32>} : memref<1x8x16x8xbf16, #tpu.memory_space<vmem>>, vector<1x1x16x8xbf16>,
    %141 = vector.extract_strided_slice %35 {offsets = [0, 56], sizes = [16, 8], strides = [1, 1]} : vector<16x192xf32> to vector<16x8xf32>
    %142 = arith.truncf %141 : vector<16x8xf32> to vector<16x8xbf16>
    %c0_93 = arith.constant 0 : index
    %c7 = arith.constant 7 : index
    %c0_94 = arith.constant 0 : index
    %c0_95 = arith.constant 0 : index
    %143 = vector.load %arg6[%c0_93, %c7, %c0_94, %c0_95] : memref<1x8x16x8xbf16, #tpu.memory_space<vmem>>, vector<1x1x16x8xbf16>
    %144 = vector.shape_cast %143 : vector<1x1x16x8xbf16> to vector<16x8xbf16>
    %145 = vector.shape_cast %142 : vector<16x8xbf16> to vector<1x1x16x8xbf16>
    tpu.vector_store %arg6[%c0_93, %c7, %c0_94, %c0_95], %145 {strides = array<i32>} : memref<1x8x16x8xbf16, #tpu.memory_space<vmem>>, vector<1x1x16x8xbf16>,
    %146 = vector.extract_strided_slice %35 {offsets = [0, 120], sizes = [16, 8], strides = [1, 1]} : vector<16x192xf32> to vector<16x8xf32>
    %147 = arith.truncf %146 : vector<16x8xf32> to vector<16x8xbf16>
    %c0_96 = arith.constant 0 : index
    %c7_97 = arith.constant 7 : index
    %c0_98 = arith.constant 0 : index
    %c0_99 = arith.constant 0 : index
    %148 = vector.load %arg7[%c0_96, %c7_97, %c0_98, %c0_99] : memref<1x8x16x8xbf16, #tpu.memory_space<vmem>>, vector<1x1x16x8xbf16>
    %149 = vector.shape_cast %148 : vector<1x1x16x8xbf16> to vector<16x8xbf16>
    %150 = vector.shape_cast %147 : vector<16x8xbf16> to vector<1x1x16x8xbf16>
    tpu.vector_store %arg7[%c0_96, %c7_97, %c0_98, %c0_99], %150 {strides = array<i32>} : memref<1x8x16x8xbf16, #tpu.memory_space<vmem>>, vector<1x1x16x8xbf16>,
    %151 = vector.extract_strided_slice %35 {offsets = [0, 184], sizes = [16, 8], strides = [1, 1]} : vector<16x192xf32> to vector<16x8xf32>
    %152 = arith.truncf %151 : vector<16x8xf32> to vector<16x8xbf16>
    %c0_100 = arith.constant 0 : index
    %c7_101 = arith.constant 7 : index
    %c0_102 = arith.constant 0 : index
    %c0_103 = arith.constant 0 : index
    %153 = vector.load %arg8[%c0_100, %c7_101, %c0_102, %c0_103] : memref<1x8x16x8xbf16, #tpu.memory_space<vmem>>, vector<1x1x16x8xbf16>
    %154 = vector.shape_cast %153 : vector<1x1x16x8xbf16> to vector<16x8xbf16>
    %155 = vector.shape_cast %152 : vector<16x8xbf16> to vector<1x1x16x8xbf16>
    tpu.vector_store %arg8[%c0_100, %c7_101, %c0_102, %c0_103], %155 {strides = array<i32>} : memref<1x8x16x8xbf16, #tpu.memory_space<vmem>>, vector<1x1x16x8xbf16>,
    return
  }
  func.func @transform_0(%arg0: i32, %arg1: i32) -> (i32, i32, i32) {
    %c0_i32 = arith.constant 0 : i32
    %c0_i32_0 = arith.constant 0 : i32
    return %arg0, %arg1, %c0_i32 : i32, i32, i32
  }
  func.func @transform_1(%arg0: i32, %arg1: i32) -> (i32, i32, i32) {
    %c0_i32 = arith.constant 0 : i32
    %c0_i32_0 = arith.constant 0 : i32
    %c0_i32_1 = arith.constant 0 : i32
    return %arg0, %c0_i32, %c0_i32_0 : i32, i32, i32
  }
  func.func @transform_2(%arg0: i32, %arg1: i32) -> (i32, i32) {
    %c0_i32 = arith.constant 0 : i32
    %c0_i32_0 = arith.constant 0 : i32
    %c0_i32_1 = arith.constant 0 : i32
    return %c0_i32, %c0_i32_0 : i32, i32
  }
  func.func @transform_3(%arg0: i32, %arg1: i32) -> (i32, i32) {
    %c0_i32 = arith.constant 0 : i32
    %c0_i32_0 = arith.constant 0 : i32
    %c0_i32_1 = arith.constant 0 : i32
    return %c0_i32, %c0_i32_0 : i32, i32
  }
  func.func @transform_4(%arg0: i32, %arg1: i32) -> (i32, i32, i32, i32) {
    %c0_i32 = arith.constant 0 : i32
    %c0_i32_0 = arith.constant 0 : i32
    %c0_i32_1 = arith.constant 0 : i32
    return %arg0, %c0_i32, %arg1, %c0_i32_0 : i32, i32, i32, i32
  }
  func.func @transform_5(%arg0: i32, %arg1: i32) -> (i32, i32, i32, i32) {
    %c0_i32 = arith.constant 0 : i32
    %c0_i32_0 = arith.constant 0 : i32
    %c0_i32_1 = arith.constant 0 : i32
    return %arg0, %c0_i32, %arg1, %c0_i32_0 : i32, i32, i32, i32
  }
  func.func @transform_6(%arg0: i32, %arg1: i32) -> (i32, i32, i32, i32) {
    %c0_i32 = arith.constant 0 : i32
    %c0_i32_0 = arith.constant 0 : i32
    %c0_i32_1 = arith.constant 0 : i32
    return %arg0, %c0_i32, %arg1, %c0_i32_0 : i32, i32, i32, i32
  }
}

</mosaic_0001>

<llo_original>
// kernel: tpu_custom_call.1
$region0: #{tpu_custom_call.1}
  #allocation0 [shape = 'u32[]', space=smem, size = 0x4, offset = 0x4, fixed_abs, tag = 'smem constant byte address 0x4 - core index']
  #allocation1 [shape = 'u32[144,128]{1,0:T(1,128)}', space=vmem, size = 0x12000, scoped, tag = 'internal scratch']
  %s0 = inlined_call_operand.hbm [shape: f32[2,16,64], index: 0, kind: input, shape index: {}]
  %s1 = inlined_call_operand.vmem [shape: f32[2,6,64], index: 1, kind: input, shape index: {}]
  %s2 = inlined_call_operand.hbm [shape: bf16[64,192], index: 2, kind: input, shape index: {}]
  %s3 = inlined_call_operand.vmem [shape: f32[1,192], index: 3, kind: input, shape index: {}]
  %s4 = inlined_call_operand.vmem [shape: bf16[2,8,16,8], index: 4, kind: output, shape index: {0}]
  %s5 = inlined_call_operand.vmem [shape: bf16[2,8,16,8], index: 5, kind: output, shape index: {1}]
  %s6 = inlined_call_operand.vmem [shape: bf16[2,8,16,8], index: 6, kind: output, shape index: {2}]
  %7 = xla_tuple %s4, %s5, %s6
  %s8 = sld [smem:[#allocation0]]
  $region73: #{tpu_custom_call.1} parent=0
    _
  %s10 = ssub.s32 1, %s8
  %s11 = scalar_select 0, %s10, %s8
  $region1: #{tpu_custom_call.1} parent=0
    #allocation2 [shape = 'u8[16384]{0}', space=vmem, size = 0x4000, scoped, tag = 'input window, operand 0']
    #allocation3 [shape = 's32[2]{0}', space=sflag, size = 0x8, scoped, tag = 'scoped memory for tpu_custom_call.1']
    #allocation4 [shape = 'u8[32768]{0}', space=vmem, size = 0x8000, scoped, tag = 'input window, operand 2, single buffered']
    #allocation5 [shape = 's32[1]{0}', space=sflag, size = 0x4, scoped, tag = 'scoped memory for tpu_custom_call.1']
    %12 = vsyncpa [#allocation3], 0
    %s13 = scalar_lea.sflag [#allocation3], 1
    %14 = vsyncpa %s13, 0
    %15 = vsyncpa [#allocation5], 0
    loop: start=0, step=1, limit=4
    $region2: #{tpu_custom_call.1} parent=1 // loop_pre_header
      _
    $region3: #{tpu_custom_call.1} parent=1 // loop_header
      %s17 = sphi 0, %s21
      %p18 = scmp.ge.s32.totalorder %s17, 4
      %s24 = sphi 0, %s36
      %s25 = sphi 0, %s32
      %s26 = sphi 0, %s24
      %s27 = sphi 0, %s25
      %s28 = sphi 0, %s26
      %s29 = sphi 0, %s27
      %s41 = sphi 0, %s43
      %s44 = sphi 0, %s41
      %s45 = sphi 0, %s44
      %s61 = sphi 0, %s45
      %s67 = sphi 0, %s69
      %s70 = sphi 0, %s67
      %s71 = sphi 0, %s70
      %s87 = sphi 0, %s71
      %s91 = sphi 0, %s91
      %s93 = sphi 0, %s91
      %s94 = sphi 0, %s93
      %s108 = sphi 0, %s94
      %s112 = sphi 0, %s112
      %s114 = sphi 0, %s112
      %s115 = sphi 0, %s114
      %s129 = sphi 0, %s115
      %s137 = sphi 0, %s139
      %s140 = sphi 0, %s137
      %s141 = sphi 0, %s140
      %s157 = sphi 0, %s141
      %s165 = sphi 0, %s167
      %s168 = sphi 0, %s165
      %s169 = sphi 0, %s168
      %s185 = sphi 0, %s169
      %s193 = sphi 0, %s195
      %s196 = sphi 0, %s193
      %s197 = sphi 0, %s196
      %s213 = sphi 0, %s197
    $region4: #{tpu_custom_call.1} parent=1 // loop_header_branch
      %20 = sbr.rel (%p18) target = $region8
    $region5: #{tpu_custom_call.1} parent=1 // loop_body
      %s22 = ssub.s32 %s17, 1
      %s23 = ssub.s32 %s17, 2
      %s30 = sadd.s32 1, %s25
      %p31 = scmp.ge.s32.totalorder %s30, 1
      %s32 = scalar_select %p31, 0, %s30
      %s33 = sadd.s32 1, %s24
      %s34 = scalar_select %p31, %s33, %s24
      %p35 = scmp.ge.s32.totalorder %s34, 2
      %s36 = scalar_select %p35, 0, %s34
      %s37 = ssub.s32 %s24, %s36
      %s38 = ssub.s32 %s25, %s32
      %s39 = sor.u32 %s37, %s38
      %p40 = scmp.eq.s32.totalorder %s39, 0
      %s42 = sadd.s32 %s41, 1
      %s43 = scalar_select %p40, %s41, %s42
      %p46 = pneg %p40
      %p47 = scmp.eq.s32.totalorder %s17, 1
      %p48 = por %p46, %p47
      %p49 = scmp.ne.s32.totalorder %s41, %s44
      %p50 = scmp.eq.s32.totalorder %s17, 0
      %p51 = por %p49, %p50
      %p52 = scmp.ne.s32.totalorder %s41, %s44
      %p53 = scmp.eq.s32.totalorder %s22, 1
      %p54 = por %p52, %p53
      %p55 = scmp.ne.s32.totalorder %s44, %s45
      %p56 = scmp.eq.s32.totalorder %s22, 0
      %p57 = por %p55, %p56
      %p58 = scmp.ne.s32.totalorder %s44, %s45
      %p59 = scmp.eq.s32.totalorder %s23, 1
      %p60 = por %p58, %p59
      %p62 = scmp.ne.s32.totalorder %s45, %s61
      %p63 = scmp.eq.s32.totalorder %s23, 0
      %p64 = por %p62, %p63
      %s65 = ssub.s32 %s24, %s36
      %p66 = scmp.eq.s32.totalorder %s65, 0
      %s68 = sadd.s32 %s67, 1
      %s69 = scalar_select %p66, %s67, %s68
      %p72 = pneg %p66
      %p73 = scmp.eq.s32.totalorder %s17, 1
      %p74 = por %p72, %p73
      %p75 = scmp.ne.s32.totalorder %s67, %s70
      %p76 = scmp.eq.s32.totalorder %s17, 0
      %p77 = por %p75, %p76
      %p78 = scmp.ne.s32.totalorder %s67, %s70
      %p79 = scmp.eq.s32.totalorder %s22, 1
      %p80 = por %p78, %p79
      %p81 = scmp.ne.s32.totalorder %s70, %s71
      %p82 = scmp.eq.s32.totalorder %s22, 0
      %p83 = por %p81, %p82
      %p84 = scmp.ne.s32.totalorder %s70, %s71
      %p85 = scmp.eq.s32.totalorder %s23, 1
      %p86 = por %p84, %p85
      %p88 = scmp.ne.s32.totalorder %s71, %s87
      %p89 = scmp.eq.s32.totalorder %s23, 0
      %p90 = por %p88, %p89
      %s92 = sadd.s32 %s91, 1
      %p95 = scmp.eq.s32.totalorder %s17, 1
      %p96 = scmp.ne.s32.totalorder %s91, %s93
      %p97 = scmp.eq.s32.totalorder %s17, 0
      %p98 = por %p96, %p97
      %p99 = scmp.ne.s32.totalorder %s91, %s93
      %p100 = scmp.eq.s32.totalorder %s22, 1
      %p101 = por %p99, %p100
      %p102 = scmp.ne.s32.totalorder %s93, %s94
      %p103 = scmp.eq.s32.totalorder %s22, 0
      %p104 = por %p102, %p103
      %p105 = scmp.ne.s32.totalorder %s93, %s94
      %p106 = scmp.eq.s32.totalorder %s23, 1
      %p107 = por %p105, %p106
      %p109 = scmp.ne.s32.totalorder %s94, %s108
      %p110 = scmp.eq.s32.totalorder %s23, 0
      %p111 = por %p109, %p110
      %s113 = sadd.s32 %s112, 1
      %p116 = scmp.eq.s32.totalorder %s17, 1
      %p117 = scmp.ne.s32.totalorder %s112, %s114
      %p118 = scmp.eq.s32.totalorder %s17, 0
      %p119 = por %p117, %p118
      %p120 = scmp.ne.s32.totalorder %s112, %s114
      %p121 = scmp.eq.s32.totalorder %s22, 1
      %p122 = por %p120, %p121
      %p123 = scmp.ne.s32.totalorder %s114, %s115
      %p124 = scmp.eq.s32.totalorder %s22, 0
      %p125 = por %p123, %p124
      %p126 = scmp.ne.s32.totalorder %s114, %s115
      %p127 = scmp.eq.s32.totalorder %s23, 1
      %p128 = por %p126, %p127
      %p130 = scmp.ne.s32.totalorder %s115, %s129
      %p131 = scmp.eq.s32.totalorder %s23, 0
      %p132 = por %p130, %p131
      %s133 = ssub.s32 %s24, %s36
      %s134 = ssub.s32 %s25, %s32
      %s135 = sor.u32 %s133, %s134
      %p136 = scmp.eq.s32.totalorder %s135, 0
      %s138 = sadd.s32 %s137, 1
      %s139 = scalar_select %p136, %s137, %s138
      %p142 = pneg %p136
      %p143 = scmp.eq.s32.totalorder %s17, 1
      %p144 = por %p142, %p143
      %p145 = scmp.ne.s32.totalorder %s137, %s140
      %p146 = scmp.eq.s32.totalorder %s17, 0
      %p147 = por %p145, %p146
      %p148 = scmp.ne.s32.totalorder %s137, %s140
      %p149 = scmp.eq.s32.totalorder %s22, 1
      %p150 = por %p148, %p149
      %p151 = scmp.ne.s32.totalorder %s140, %s141
      %p152 = scmp.eq.s32.totalorder %s22, 0
      %p153 = por %p151, %p152
      %p154 = scmp.ne.s32.totalorder %s140, %s141
      %p155 = scmp.eq.s32.totalorder %s23, 1
      %p156 = por %p154, %p155
      %p158 = scmp.ne.s32.totalorder %s141, %s157
      %p159 = scmp.eq.s32.totalorder %s23, 0
      %p160 = por %p158, %p159
      %s161 = ssub.s32 %s24, %s36
      %s162 = ssub.s32 %s25, %s32
      %s163 = sor.u32 %s161, %s162
      %p164 = scmp.eq.s32.totalorder %s163, 0
      %s166 = sadd.s32 %s165, 1
      %s167 = scalar_select %p164, %s165, %s166
      %p170 = pneg %p164
      %p171 = scmp.eq.s32.totalorder %s17, 1
      %p172 = por %p170, %p171
      %p173 = scmp.ne.s32.totalorder %s165, %s168
      %p174 = scmp.eq.s32.totalorder %s17, 0
      %p175 = por %p173, %p174
      %p176 = scmp.ne.s32.totalorder %s165, %s168
      %p177 = scmp.eq.s32.totalorder %s22, 1
      %p178 = por %p176, %p177
      %p179 = scmp.ne.s32.totalorder %s168, %s169
      %p180 = scmp.eq.s32.totalorder %s22, 0
      %p181 = por %p179, %p180
      %p182 = scmp.ne.s32.totalorder %s168, %s169
      %p183 = scmp.eq.s32.totalorder %s23, 1
      %p184 = por %p182, %p183
      %p186 = scmp.ne.s32.totalorder %s169, %s185
      %p187 = scmp.eq.s32.totalorder %s23, 0
      %p188 = por %p186, %p187
      %s189 = ssub.s32 %s24, %s36
      %s190 = ssub.s32 %s25, %s32
      %s191 = sor.u32 %s189, %s190
      %p192 = scmp.eq.s32.totalorder %s191, 0
      %s194 = sadd.s32 %s193, 1
      %s195 = scalar_select %p192, %s193, %s194
      %p198 = pneg %p192
      %p199 = scmp.eq.s32.totalorder %s17, 1
      %p200 = por %p198, %p199
      %p201 = scmp.ne.s32.totalorder %s193, %s196
      %p202 = scmp.eq.s32.totalorder %s17, 0
      %p203 = por %p201, %p202
      %p204 = scmp.ne.s32.totalorder %s193, %s196
      %p205 = scmp.eq.s32.totalorder %s22, 1
      %p206 = por %p204, %p205
      %p207 = scmp.ne.s32.totalorder %s196, %s197
      %p208 = scmp.eq.s32.totalorder %s22, 0
      %p209 = por %p207, %p208
      %p210 = scmp.ne.s32.totalorder %s196, %s197
      %p211 = scmp.eq.s32.totalorder %s23, 1
      %p212 = por %p210, %p211
      %p214 = scmp.ne.s32.totalorder %s197, %s213
      %p215 = scmp.eq.s32.totalorder %s23, 0
      %p216 = por %p214, %p215
      %p217 = scmp.le.s32.totalorder 1, %s17
      %p218 = scmp.lt.s32.totalorder %s17, 3
      %p219 = pnand %p217, %p218
      %p220 = pneg %p219
      // Predicated region
      $region9: #{tpu_custom_call.1} parent=5 // pred_check
        _
      $region10: #{tpu_custom_call.1} parent=5 // pred_check_branch
        %222 = sbr.rel (%p219) target = $region12
      $region11: #{tpu_custom_call.1} parent=5 // pred_region
        %s223 = ssub.s32 %s17, 1
        // Predicated region
        $region13: #{tpu_custom_call.1} parent=11 // pred_check
          %p224 = pneg %p104
        $region14: #{tpu_custom_call.1} parent=11 // pred_check_branch
          %226 = sbr.rel (%p224) target = $region16
        $region15: #{tpu_custom_call.1} parent=11 // pred_region
          %s228 = ssub.s32 1024, 1024
          %229 = vsyncadd [#allocation5], %s228
          %s230 = sshll.u32 [#allocation4], 4
          %s231 = int_to_ptr.vmem [resolvable:$true] %s230
          %236 = dma.hbm_to_vmem [thread:$0]  %s2, 1024, %s231, [#allocation5], 128, 128, 8
        $region16: #{tpu_custom_call.1} parent=11 // pred_fallthru
          _
        // Predicated region
        $region17: #{tpu_custom_call.1} parent=11 // pred_check
          %p237 = pneg %p125
        $region18: #{tpu_custom_call.1} parent=11 // pred_check_branch
          %239 = sbr.rel (%p237) target = $region20
        $region19: #{tpu_custom_call.1} parent=11 // pred_region
          _
        $region20: #{tpu_custom_call.1} parent=11 // pred_fallthru
          _
      $region12: #{tpu_custom_call.1} parent=5 // pred_fallthru
        _
      %p240 = scmp.lt.s32.totalorder %s17, 2
      // Predicated region
      $region21: #{tpu_custom_call.1} parent=5 // pred_check
        %p241 = pneg %p240
      $region22: #{tpu_custom_call.1} parent=5 // pred_check_branch
        %243 = sbr.rel (%p241) target = $region24
      $region23: #{tpu_custom_call.1} parent=5 // pred_region
        // Predicated region
        $region25: #{tpu_custom_call.1} parent=23 // pred_check
          %p244 = pneg %p51
        $region26: #{tpu_custom_call.1} parent=23 // pred_check_branch
          %246 = sbr.rel (%p244) target = $region28
        $region27: #{tpu_custom_call.1} parent=23 // pred_region
          %s247 = sand.u32 %s41, 1
          %s248 = scalar_lea.sflag [#allocation3], %s247
          %s249 = sand.u32 %s41, 1
          %s250 = smul.addr %s249, 16
          %s251 = scalar_lea.vmem [#allocation2], %s250
          %s252 = smul.u32 2, %s25
          %s254 = ssub.s32 256, 256
          %255 = vsyncadd %s248, %s254
          %s256 = smul.addr %s24, 2
          %s257 = sadd.s32 %s252, %s256
          %s258 = smul.addr %s257, 128
          %s259 = scalar_lea.hbm %s0, %s258
          %s260 = sshll.u32 %s251, 4
          %s261 = int_to_ptr.vmem [resolvable:$true] %s260
          %266 = dma.hbm_to_vmem [thread:$0]  %s259, 256, %s261, %s248, 128, 128, 8
        $region28: #{tpu_custom_call.1} parent=23 // pred_fallthru
          _
        // Predicated region
        $region29: #{tpu_custom_call.1} parent=23 // pred_check
          %p267 = pneg %p77
        $region30: #{tpu_custom_call.1} parent=23 // pred_check_branch
          %269 = sbr.rel (%p267) target = $region32
        $region31: #{tpu_custom_call.1} parent=23 // pred_region
          %p270 = scmp.lt.s32.totalorder %s24, 1
          %s271 = scalar_select %p270, %s24, 1
          %s272 = smul.addr %s271, 8
          %s273 = scalar_lea.vmem %s1, %s272
        $region32: #{tpu_custom_call.1} parent=23 // pred_fallthru
          _
      $region24: #{tpu_custom_call.1} parent=5 // pred_fallthru
        _
      %p274 = scmp.le.s32.totalorder 1, %s17
      %p275 = scmp.lt.s32.totalorder %s17, 3
      %p276 = pnand %p274, %p275
      %p277 = pneg %p276
      // Predicated region
      $region33: #{tpu_custom_call.1} parent=5 // pred_check
        _
      $region34: #{tpu_custom_call.1} parent=5 // pred_check_branch
        %279 = sbr.rel (%p276) target = $region36
      $region35: #{tpu_custom_call.1} parent=5 // pred_region
        %s280 = ssub.s32 %s17, 1
        %s281 = sand.u32 %s44, 1
        %s282 = scalar_lea.sflag [#allocation3], %s281
        %s283 = sand.u32 %s44, 1
        %s284 = smul.addr %s283, 16
        %s285 = scalar_lea.vmem [#allocation2], %s284
        // Predicated region
        $region37: #{tpu_custom_call.1} parent=35 // pred_check
          %p286 = pneg %p57
        $region38: #{tpu_custom_call.1} parent=35 // pred_check_branch
          %288 = sbr.rel (%p286) target = $region40
        $region39: #{tpu_custom_call.1} parent=35 // pred_region
          %289 = dma.done %s282, 256
        $region40: #{tpu_custom_call.1} parent=35 // pred_fallthru
          _
        // Predicated region
        $region41: #{tpu_custom_call.1} parent=35 // pred_check
          %p290 = pneg %p104
        $region42: #{tpu_custom_call.1} parent=35 // pred_check_branch
          %292 = sbr.rel (%p290) target = $region44
        $region43: #{tpu_custom_call.1} parent=35 // pred_region
          %293 = dma.done [#allocation5], 1024
        $region44: #{tpu_custom_call.1} parent=35 // pred_fallthru
          _
        %s294 = sand.u32 %s44, 1
        %s295 = scalar_lea.sflag [#allocation3], %s294
        %s296 = sand.u32 %s44, 1
        %s297 = smul.addr %s296, 16
        %s298 = scalar_lea.vmem [#allocation2], %s297
        %p299 = pneg %p57
        %p300 = pneg %p54
        %p301 = scmp.lt.s32.totalorder %s26, 1
        %s302 = scalar_select %p301, %s26, 1
        %s303 = smul.addr %s302, 8
        %s304 = scalar_lea.vmem %s1, %s303
        %p305 = pneg %p83
        %p306 = pneg %p80
        %p307 = pneg %p104
        %p308 = pneg %p101
        %p309 = pneg %p125
        %p310 = pneg %p122
        %p311 = pneg %p153
        %p312 = pneg %p150
        %s313 = smul.u32 2, %s27
        %p314 = scmp.lt.s32.totalorder %s26, 1
        %s315 = scalar_select %p314, %s26, 1
        %p316 = scmp.lt.s32.totalorder %s313, 1
        %s317 = scalar_select %p316, %s313, 1
        %s318 = smul.addr %s315, 16
        %s319 = sadd.s32 %s317, %s318
        %s320 = smul.addr %s319, 4
        %s321 = scalar_lea.vmem %s4, %s320
        %p322 = pneg %p181
        %p323 = pneg %p178
        %s324 = smul.u32 2, %s27
        %p325 = scmp.lt.s32.totalorder %s26, 1
        %s326 = scalar_select %p325, %s26, 1
        %p327 = scmp.lt.s32.totalorder %s324, 1
        %s328 = scalar_select %p327, %s324, 1
        %s329 = smul.addr %s326, 16
        %s330 = sadd.s32 %s328, %s329
        %s331 = smul.addr %s330, 4
        %s332 = scalar_lea.vmem %s5, %s331
        %p333 = pneg %p209
        %p334 = pneg %p206
        %s335 = smul.u32 2, %s27
        %p336 = scmp.lt.s32.totalorder %s26, 1
        %s337 = scalar_select %p336, %s26, 1
        %p338 = scmp.lt.s32.totalorder %s335, 1
        %s339 = scalar_select %p338, %s335, 1
        %s340 = smul.addr %s337, 16
        %s341 = sadd.s32 %s339, %s340
        %s342 = smul.addr %s341, 4
        %s343 = scalar_lea.vmem %s6, %s342
        %s344 = smul.u32 2, %s27
        %p345 = scmp.lt.s32.totalorder %s26, 1
        %s346 = scalar_select %p345, %s26, 1
        %s347 = smul.addr %s346, 8
        %s348 = scalar_lea.vmem %s1, %s347
        %s349 = smul.u32 2, %s27
        %p350 = scmp.lt.s32.totalorder %s26, 1
        %s351 = scalar_select %p350, %s26, 1
        %p352 = scmp.lt.s32.totalorder %s349, 1
        %s353 = scalar_select %p352, %s349, 1
        %s354 = smul.addr %s351, 16
        %s355 = sadd.s32 %s353, %s354
        %s356 = smul.addr %s355, 4
        %s357 = scalar_lea.vmem %s4, %s356
        %s358 = smul.u32 2, %s27
        %s359 = smul.u32 2, %s27
        %p360 = scmp.lt.s32.totalorder %s26, 1
        %s361 = scalar_select %p360, %s26, 1
        %p362 = scmp.lt.s32.totalorder %s359, 1
        %s363 = scalar_select %p362, %s359, 1
        %s364 = smul.addr %s361, 16
        %s365 = sadd.s32 %s363, %s364
        %s366 = smul.addr %s365, 4
        %s367 = scalar_lea.vmem %s5, %s366
        %s368 = smul.u32 2, %s27
        %s369 = smul.u32 2, %s27
        %p370 = scmp.lt.s32.totalorder %s26, 1
        %s371 = scalar_select %p370, %s26, 1
        %p372 = scmp.lt.s32.totalorder %s369, 1
        %s373 = scalar_select %p372, %s369, 1
        %s374 = smul.addr %s371, 16
        %s375 = sadd.s32 %s373, %s374
        %s376 = smul.addr %s375, 4
        %s377 = scalar_lea.vmem %s6, %s376
        %s378 = smul.u32 2, %s27
        %v380 = vld [vmem:[%s285] sm:$0xff]
        %v381 = vld [vmem:[%s285 + $0x8] sm:$0xff]
        %v382 = vld [vmem:[%s348] sm:$0x3f]
        %vm383 = vcmask 523264
        %v384 = vsel %vm383, %v380, 0.0
        %385 = vadd.xlane.f32.xlu0 %v384
        %v386 = vpop.xlane.xlu0 %385
        %v387 = vsel %vm383, %v381, 0.0
        %388 = vadd.xlane.f32.xlu0 %v387
        %v389 = vpop.xlane.xlu0 %388
        %v390 = vrcp.pop 64.0
        %v391 = vmul.f32 %v386, %v390
        %v392 = vmul.f32 %v389, %v390
        %v393 = vmul.f32 %v380, %v380
        %v394 = vmul.f32 %v381, %v381
        %v395 = vsel %vm383, %v393, 0.0
        %396 = vadd.xlane.f32.xlu0 %v395
        %v397 = vpop.xlane.xlu0 %396
        %v398 = vsel %vm383, %v394, 0.0
        %399 = vadd.xlane.f32.xlu0 %v398
        %v400 = vpop.xlane.xlu0 %399
        %v401 = vmul.f32 %v397, %v390
        %v402 = vmul.f32 %v400, %v390
        %v403 = vmul.f32 %v391, %v391
        %v404 = vmul.f32 %v392, %v392
        %v405 = vsub.f32 %v401, %v403
        %v406 = vsub.f32 %v402, %v404
        %v407 = vmax.f32 %v405, 0.0
        %v408 = vmax.f32 %v406, 0.0
        %v409 = vsub.f32 %v380, %v391
        %v410 = vsub.f32 %v381, %v392
        %v411 = vadd.f32 %v407, 1e-05
        %v412 = vadd.f32 %v408, 1e-05
        %v413 = vrsqrt.pop %v411
        %v414 = vrsqrt.pop %v412
        %v415 = vmul.f32 %v409, %v413
        %v416 = vmul.f32 %v410, %v414
        %v417 = vlaneseq
        %v418 = vshrl.u32 %v417, 7
        %v419 = vsub.s32 1, %v418
        %v420 = vrot.slane %v382, %v419
        %v421 = vmul.f32 %v415, %v420
        %v422 = vmul.f32 %v416, %v420
        %v423 = vlaneseq
        %v424 = vshrl.u32 %v423, 7
        %v425 = vsub.s32 0, %v424
        %v426 = vrot.slane %v382, %v425
        %v427 = vadd.f32 %v421, %v426
        %v428 = vadd.f32 %v422, %v426
        %v429 = vpack.c.bf16 %v428, %v427
        %v430 = vld [vmem:[#allocation4] sm:$0xff]
        %v431 = vld [vmem:[#allocation4 + $0x8] sm:$0xff]
        %v432 = vld [vmem:[#allocation4 + $0x10] sm:$0xff]
        %v433 = vld [vmem:[#allocation4 + $0x18] sm:$0xff]
        %v434 = vld [vmem:[#allocation4 + $0x20] sm:$0xff]
        %v435 = vld [vmem:[#allocation4 + $0x28] sm:$0xff]
        %v436 = vld [vmem:[#allocation4 + $0x30] sm:$0xff]
        %v437 = vld [vmem:[#allocation4 + $0x38] sm:$0xff]
        %v438 = vld [vmem:[%s3] sm:$0x3]
        %v440 = vlaneseq
        %v441 = vshrl.u32 %v440, 7
        %v442 = vsub.s32 0, %v441
        %v443 = vrot.slane %v438, %v442
        %v444 = vlaneseq
        %v445 = vshrl.u32 %v444, 7
        %v446 = vsub.s32 1, %v445
        %v447 = vrot.slane %v438, %v446
        %v458 = vunpack.c.l.b16 %v430
        %v459 = vunpack.c.h.b16 %v430
        %v460 = vunpack.c.l.b16 %v431
        %v461 = vunpack.c.h.b16 %v431
        %v462 = vunpack.c.l.b16 %v432
        %v463 = vunpack.c.h.b16 %v432
        %v464 = vunpack.c.l.b16 %v433
        %v465 = vunpack.c.h.b16 %v433
        %v466 = vunpack.c.l.b16 %v434
        %v467 = vunpack.c.h.b16 %v434
        %v468 = vunpack.c.l.b16 %v435
        %v469 = vunpack.c.h.b16 %v435
        %v470 = vunpack.c.l.b16 %v436
        %v471 = vunpack.c.h.b16 %v436
        %v472 = vunpack.c.l.b16 %v437
        %v473 = vunpack.c.h.b16 %v437
        %v474 = vpack.c.b16 %v460, %v458
        %v475 = vpack.c.b16 %v461, %v459
        %v476 = vpack.c.b16 %v464, %v462
        %v477 = vpack.c.b16 %v465, %v463
        %v478 = vpack.c.b16 %v468, %v466
        %v479 = vpack.c.b16 %v469, %v467
        %v480 = vpack.c.b16 %v472, %v470
        %v481 = vpack.c.b16 %v473, %v471
        %v491 = vsel %vm383, %v429, 0
        %493 = vmatprep.subr.bf16.mxu0 0
        %494 = vmatpush1.bf16.msra.mxu0 0
        %495 = vmatprep.subr.bf16.mxu0 0
        %496 = vmatpush1.bf16.msra.mxu0 0
        %497 = vmatprep.subr.bf16.mxu0 0
        %498 = vmatpush1.bf16.msra.mxu0 0
        %499 = vmatprep.subr.bf16.mxu0 0
        %500 = vmatpush1.bf16.msra.mxu0 0
        %501 = vmatprep.subr.bf16.mxu0 %v481
        %502 = vmatpush1.bf16.msra.mxu0 %v480
        %503 = vmatprep.subr.bf16.mxu0 %v479
        %504 = vmatpush1.bf16.msra.mxu0 %v478
        %505 = vmatprep.subr.bf16.mxu0 %v477
        %506 = vmatpush1.bf16.msra.mxu0 %v476
        %507 = vmatprep.subr.bf16.mxu0 %v475
        %508 = vmatpush1.bf16.msra.mxu0 %v474
        %509 = vmatprep.subr.bf16.mxu0 0
        %510 = vmatpush2.bf16.msra.mxu0 0
        %511 = vmatprep.subr.bf16.mxu0 0
        %512 = vmatpush2.bf16.msra.mxu0 0
        %513 = vmatprep.subr.bf16.mxu0 0
        %514 = vmatpush2.bf16.msra.mxu0 0
        %515 = vmatprep.subr.bf16.mxu0 0
        %516 = vmatpush2.bf16.msra.mxu0 0
        %517 = vmatprep.subr.bf16.mxu0 0
        %518 = vmatpush2.bf16.msra.mxu0 0
        %519 = vmatprep.subr.bf16.mxu0 0
        %520 = vmatpush2.bf16.msra.mxu0 0
        %521 = vmatprep.subr.bf16.mxu0 0
        %522 = vmatpush2.bf16.msra.mxu0 0
        %523 = vmatprep.subr.bf16.mxu0 0
        %524 = vmatpush2.bf16.msra.mxu0 0
        %525 = vmatprep.mubr.bf16.mxu0 0
        %526 = vmatmul.mubr.bf16.gmra.mxu0 %v491
        %v527 = vpop.f32.mrf.mxu0
        %v528 = vadd.f32 %v443, %v527
        %v529 = vpop.f32.mrf.mxu0
        %v530 = vadd.f32 %v447, %v529
        %v531 = vpop.f32.mrf.mxu0
        %v532 = vadd.f32 %v443, %v531
        %v533 = vpop.f32.mrf.mxu0
        %v534 = vadd.f32 %v447, %v533
        %535 = vdwg.mxu0
        %v536 = vpack.c.bf16 %v532, %v528
        %v538 = vunpack.c.l.b16 %v536
        %v539 = vunpack.c.h.b16 %v536
        %v540 = vpack.c.b16 %v538, %v538
        %v541 = vpack.c.b16 %v539, %v539
        %vm544 = vcmask 60416
        %545 = vst.msk [vmem:[%s357] sm:$0xf] %vm544, %v540
        %546 = vst.msk [vmem:[%s357 + $0x4] sm:$0xf] %vm544, %v541
        %547 = vrot.lane.b32.xlu0 %v540, 64
        %v548 = vpop.permute.xlu0 %547
        %549 = vrot.lane.b32.xlu0 %v541, 64
        %v550 = vpop.permute.xlu0 %549
        %553 = vst.msk [vmem:[%s367] sm:$0xf] %vm544, %v548
        %554 = vst.msk [vmem:[%s367 + $0x4] sm:$0xf] %vm544, %v550
        %v555 = vpack.c.bf16 %v534, %v530
        %v557 = vunpack.c.l.b16 %v555
        %v558 = vunpack.c.h.b16 %v555
        %v559 = vpack.c.b16 %v557, %v557
        %v560 = vpack.c.b16 %v558, %v558
        %563 = vst.msk [vmem:[%s377] sm:$0xf] %vm544, %v559
        %564 = vst.msk [vmem:[%s377 + $0x4] sm:$0xf] %vm544, %v560
        %565 = vrot.lane.b32.xlu0 %v540, 120
        %v566 = vpop.permute.xlu0 %565
        %567 = vrot.lane.b32.xlu0 %v541, 120
        %v568 = vpop.permute.xlu0 %567
        %s571 = scalar_lea.vmem %s357, 8
        %572 = vst.msk [vmem:[%s571] sm:$0xf] %vm544, %v566
        %573 = vst.msk [vmem:[%s571 + $0x4] sm:$0xf] %vm544, %v568
        %574 = vrot.lane.b32.xlu0 %v540, 56
        %v575 = vpop.permute.xlu0 %574
        %576 = vrot.lane.b32.xlu0 %v541, 56
        %v577 = vpop.permute.xlu0 %576
        %s580 = scalar_lea.vmem %s367, 8
        %581 = vst.msk [vmem:[%s580] sm:$0xf] %vm544, %v575
        %582 = vst.msk [vmem:[%s580 + $0x4] sm:$0xf] %vm544, %v577
        %583 = vrot.lane.b32.xlu0 %v559, 120
        %v584 = vpop.permute.xlu0 %583
        %585 = vrot.lane.b32.xlu0 %v560, 120
        %v586 = vpop.permute.xlu0 %585
        %s589 = scalar_lea.vmem %s377, 8
        %590 = vst.msk [vmem:[%s589] sm:$0xf] %vm544, %v584
        %591 = vst.msk [vmem:[%s589 + $0x4] sm:$0xf] %vm544, %v586
        %592 = vrot.lane.b32.xlu0 %v540, 112
        %v593 = vpop.permute.xlu0 %592
        %594 = vrot.lane.b32.xlu0 %v541, 112
        %v595 = vpop.permute.xlu0 %594
        %s598 = scalar_lea.vmem %s357, 16
        %599 = vst.msk [vmem:[%s598] sm:$0xf] %vm544, %v593
        %600 = vst.msk [vmem:[%s598 + $0x4] sm:$0xf] %vm544, %v595
        %601 = vrot.lane.b32.xlu0 %v540, 48
        %v602 = vpop.permute.xlu0 %601
        %603 = vrot.lane.b32.xlu0 %v541, 48
        %v604 = vpop.permute.xlu0 %603
        %s607 = scalar_lea.vmem %s367, 16
        %608 = vst.msk [vmem:[%s607] sm:$0xf] %vm544, %v602
        %609 = vst.msk [vmem:[%s607 + $0x4] sm:$0xf] %vm544, %v604
        %610 = vrot.lane.b32.xlu0 %v559, 112
        %v611 = vpop.permute.xlu0 %610
        %612 = vrot.lane.b32.xlu0 %v560, 112
        %v613 = vpop.permute.xlu0 %612
        %s616 = scalar_lea.vmem %s377, 16
        %617 = vst.msk [vmem:[%s616] sm:$0xf] %vm544, %v611
        %618 = vst.msk [vmem:[%s616 + $0x4] sm:$0xf] %vm544, %v613
        %619 = vrot.lane.b32.xlu0 %v540, 104
        %v620 = vpop.permute.xlu0 %619
        %621 = vrot.lane.b32.xlu0 %v541, 104
        %v622 = vpop.permute.xlu0 %621
        %s625 = scalar_lea.vmem %s357, 24
        %626 = vst.msk [vmem:[%s625] sm:$0xf] %vm544, %v620
        %627 = vst.msk [vmem:[%s625 + $0x4] sm:$0xf] %vm544, %v622
        %628 = vrot.lane.b32.xlu0 %v540, 40
        %v629 = vpop.permute.xlu0 %628
        %630 = vrot.lane.b32.xlu0 %v541, 40
        %v631 = vpop.permute.xlu0 %630
        %s634 = scalar_lea.vmem %s367, 24
        %635 = vst.msk [vmem:[%s634] sm:$0xf] %vm544, %v629
        %636 = vst.msk [vmem:[%s634 + $0x4] sm:$0xf] %vm544, %v631
        %637 = vrot.lane.b32.xlu0 %v559, 104
        %v638 = vpop.permute.xlu0 %637
        %639 = vrot.lane.b32.xlu0 %v560, 104
        %v640 = vpop.permute.xlu0 %639
        %s643 = scalar_lea.vmem %s377, 24
        %644 = vst.msk [vmem:[%s643] sm:$0xf] %vm544, %v638
        %645 = vst.msk [vmem:[%s643 + $0x4] sm:$0xf] %vm544, %v640
        %646 = vrot.lane.b32.xlu0 %v540, 96
        %v647 = vpop.permute.xlu0 %646
        %648 = vrot.lane.b32.xlu0 %v541, 96
        %v649 = vpop.permute.xlu0 %648
        %s652 = scalar_lea.vmem %s357, 32
        %653 = vst.msk [vmem:[%s652] sm:$0xf] %vm544, %v647
        %654 = vst.msk [vmem:[%s652 + $0x4] sm:$0xf] %vm544, %v649
        %655 = vrot.lane.b32.xlu0 %v540, 32
        %v656 = vpop.permute.xlu0 %655
        %657 = vrot.lane.b32.xlu0 %v541, 32
        %v658 = vpop.permute.xlu0 %657
        %s661 = scalar_lea.vmem %s367, 32
        %662 = vst.msk [vmem:[%s661] sm:$0xf] %vm544, %v656
        %663 = vst.msk [vmem:[%s661 + $0x4] sm:$0xf] %vm544, %v658
        %664 = vrot.lane.b32.xlu0 %v559, 96
        %v665 = vpop.permute.xlu0 %664
        %666 = vrot.lane.b32.xlu0 %v560, 96
        %v667 = vpop.permute.xlu0 %666
        %s670 = scalar_lea.vmem %s377, 32
        %671 = vst.msk [vmem:[%s670] sm:$0xf] %vm544, %v665
        %672 = vst.msk [vmem:[%s670 + $0x4] sm:$0xf] %vm544, %v667
        %673 = vrot.lane.b32.xlu0 %v540, 88
        %v674 = vpop.permute.xlu0 %673
        %675 = vrot.lane.b32.xlu0 %v541, 88
        %v676 = vpop.permute.xlu0 %675
        %s679 = scalar_lea.vmem %s357, 40
        %680 = vst.msk [vmem:[%s679] sm:$0xf] %vm544, %v674
        %681 = vst.msk [vmem:[%s679 + $0x4] sm:$0xf] %vm544, %v676
        %682 = vrot.lane.b32.xlu0 %v540, 24
        %v683 = vpop.permute.xlu0 %682
        %684 = vrot.lane.b32.xlu0 %v541, 24
        %v685 = vpop.permute.xlu0 %684
        %s688 = scalar_lea.vmem %s367, 40
        %689 = vst.msk [vmem:[%s688] sm:$0xf] %vm544, %v683
        %690 = vst.msk [vmem:[%s688 + $0x4] sm:$0xf] %vm544, %v685
        %691 = vrot.lane.b32.xlu0 %v559, 88
        %v692 = vpop.permute.xlu0 %691
        %693 = vrot.lane.b32.xlu0 %v560, 88
        %v694 = vpop.permute.xlu0 %693
        %s697 = scalar_lea.vmem %s377, 40
        %698 = vst.msk [vmem:[%s697] sm:$0xf] %vm544, %v692
        %699 = vst.msk [vmem:[%s697 + $0x4] sm:$0xf] %vm544, %v694
        %700 = vrot.lane.b32.xlu0 %v540, 80
        %v701 = vpop.permute.xlu0 %700
        %702 = vrot.lane.b32.xlu0 %v541, 80
        %v703 = vpop.permute.xlu0 %702
        %s706 = scalar_lea.vmem %s357, 48
        %707 = vst.msk [vmem:[%s706] sm:$0xf] %vm544, %v701
        %708 = vst.msk [vmem:[%s706 + $0x4] sm:$0xf] %vm544, %v703
        %709 = vrot.lane.b32.xlu0 %v540, 16
        %v710 = vpop.permute.xlu0 %709
        %711 = vrot.lane.b32.xlu0 %v541, 16
        %v712 = vpop.permute.xlu0 %711
        %s715 = scalar_lea.vmem %s367, 48
        %716 = vst.msk [vmem:[%s715] sm:$0xf] %vm544, %v710
        %717 = vst.msk [vmem:[%s715 + $0x4] sm:$0xf] %vm544, %v712
        %718 = vrot.lane.b32.xlu0 %v559, 80
        %v719 = vpop.permute.xlu0 %718
        %720 = vrot.lane.b32.xlu0 %v560, 80
        %v721 = vpop.permute.xlu0 %720
        %s724 = scalar_lea.vmem %s377, 48
        %725 = vst.msk [vmem:[%s724] sm:$0xf] %vm544, %v719
        %726 = vst.msk [vmem:[%s724 + $0x4] sm:$0xf] %vm544, %v721
        %727 = vrot.lane.b32.xlu0 %v540, 72
        %v728 = vpop.permute.xlu0 %727
        %729 = vrot.lane.b32.xlu0 %v541, 72
        %v730 = vpop.permute.xlu0 %729
        %s733 = scalar_lea.vmem %s357, 56
        %734 = vst.msk [vmem:[%s733] sm:$0xf] %vm544, %v728
        %735 = vst.msk [vmem:[%s733 + $0x4] sm:$0xf] %vm544, %v730
        %736 = vrot.lane.b32.xlu0 %v540, 8
        %v737 = vpop.permute.xlu0 %736
        %738 = vrot.lane.b32.xlu0 %v541, 8
        %v739 = vpop.permute.xlu0 %738
        %s742 = scalar_lea.vmem %s367, 56
        %743 = vst.msk [vmem:[%s742] sm:$0xf] %vm544, %v737
        %744 = vst.msk [vmem:[%s742 + $0x4] sm:$0xf] %vm544, %v739
        %745 = vrot.lane.b32.xlu0 %v559, 72
        %v746 = vpop.permute.xlu0 %745
        %747 = vrot.lane.b32.xlu0 %v560, 72
        %v748 = vpop.permute.xlu0 %747
        %s751 = scalar_lea.vmem %s377, 56
        %752 = vst.msk [vmem:[%s751] sm:$0xf] %vm544, %v746
        %753 = vst.msk [vmem:[%s751 + $0x4] sm:$0xf] %vm544, %v748
        %s754 = smul.u32 2, %s27
        %p755 = scmp.lt.s32.totalorder %s26, 1
        %s756 = scalar_select %p755, %s26, 1
        %p757 = scmp.lt.s32.totalorder %s754, 1
        %s758 = scalar_select %p757, %s754, 1
        %s759 = smul.addr %s756, 16
        %s760 = sadd.s32 %s758, %s759
        %s761 = smul.addr %s760, 4
        %s762 = scalar_lea.vmem %s4, %s761
        %s763 = smul.u32 2, %s27
        %p764 = scmp.lt.s32.totalorder %s26, 1
        %s765 = scalar_select %p764, %s26, 1
        %p766 = scmp.lt.s32.totalorder %s763, 1
        %s767 = scalar_select %p766, %s763, 1
        %s768 = smul.addr %s765, 16
        %s769 = sadd.s32 %s767, %s768
        %s770 = smul.addr %s769, 4
        %s771 = scalar_lea.vmem %s5, %s770
        %s772 = smul.u32 2, %s27
        %p773 = scmp.lt.s32.totalorder %s26, 1
        %s774 = scalar_select %p773, %s26, 1
        %p775 = scmp.lt.s32.totalorder %s772, 1
        %s776 = scalar_select %p775, %s772, 1
        %s777 = smul.addr %s774, 16
        %s778 = sadd.s32 %s776, %s777
        %s779 = smul.addr %s778, 4
        %s780 = scalar_lea.vmem %s6, %s779
        // Predicated region
        $region45: #{tpu_custom_call.1} parent=35 // pred_check
          %p781 = pneg %p150
        $region46: #{tpu_custom_call.1} parent=35 // pred_check_branch
          %783 = sbr.rel (%p781) target = $region48
        $region47: #{tpu_custom_call.1} parent=35 // pred_region
          %s784 = smul.u32 2, %s27
        $region48: #{tpu_custom_call.1} parent=35 // pred_fallthru
          _
        // Predicated region
        $region49: #{tpu_custom_call.1} parent=35 // pred_check
          %p785 = pneg %p178
        $region50: #{tpu_custom_call.1} parent=35 // pred_check_branch
          %787 = sbr.rel (%p785) target = $region52
        $region51: #{tpu_custom_call.1} parent=35 // pred_region
          %s788 = smul.u32 2, %s27
        $region52: #{tpu_custom_call.1} parent=35 // pred_fallthru
          _
        // Predicated region
        $region53: #{tpu_custom_call.1} parent=35 // pred_check
          %p789 = pneg %p206
        $region54: #{tpu_custom_call.1} parent=35 // pred_check_branch
          %791 = sbr.rel (%p789) target = $region56
        $region55: #{tpu_custom_call.1} parent=35 // pred_region
          %s792 = smul.u32 2, %s27
        $region56: #{tpu_custom_call.1} parent=35 // pred_fallthru
          _
      $region36: #{tpu_custom_call.1} parent=5 // pred_fallthru
        _
      %p793 = scmp.le.s32.totalorder 2, %s17
      // Predicated region
      $region57: #{tpu_custom_call.1} parent=5 // pred_check
        %p794 = pneg %p793
      $region58: #{tpu_custom_call.1} parent=5 // pred_check_branch
        %796 = sbr.rel (%p794) target = $region60
      $region59: #{tpu_custom_call.1} parent=5 // pred_region
        %s797 = ssub.s32 %s17, 2
        // Predicated region
        $region61: #{tpu_custom_call.1} parent=59 // pred_check
          %p798 = pneg %p156
        $region62: #{tpu_custom_call.1} parent=59 // pred_check_branch
          %800 = sbr.rel (%p798) target = $region64
        $region63: #{tpu_custom_call.1} parent=59 // pred_region
          %s801 = smul.u32 2, %s29
          %p802 = scmp.lt.s32.totalorder %s28, 1
          %s803 = scalar_select %p802, %s28, 1
          %p804 = scmp.lt.s32.totalorder %s801, 1
          %s805 = scalar_select %p804, %s801, 1
          %s806 = smul.addr %s803, 16
          %s807 = sadd.s32 %s805, %s806
          %s808 = smul.addr %s807, 4
          %s809 = scalar_lea.vmem %s4, %s808
        $region64: #{tpu_custom_call.1} parent=59 // pred_fallthru
          _
        // Predicated region
        $region65: #{tpu_custom_call.1} parent=59 // pred_check
          %p810 = pneg %p184
        $region66: #{tpu_custom_call.1} parent=59 // pred_check_branch
          %812 = sbr.rel (%p810) target = $region68
        $region67: #{tpu_custom_call.1} parent=59 // pred_region
          %s813 = smul.u32 2, %s29
          %p814 = scmp.lt.s32.totalorder %s28, 1
          %s815 = scalar_select %p814, %s28, 1
          %p816 = scmp.lt.s32.totalorder %s813, 1
          %s817 = scalar_select %p816, %s813, 1
          %s818 = smul.addr %s815, 16
          %s819 = sadd.s32 %s817, %s818
          %s820 = smul.addr %s819, 4
          %s821 = scalar_lea.vmem %s5, %s820
        $region68: #{tpu_custom_call.1} parent=59 // pred_fallthru
          _
        // Predicated region
        $region69: #{tpu_custom_call.1} parent=59 // pred_check
          %p822 = pneg %p212
        $region70: #{tpu_custom_call.1} parent=59 // pred_check_branch
          %824 = sbr.rel (%p822) target = $region72
        $region71: #{tpu_custom_call.1} parent=59 // pred_region
          %s825 = smul.u32 2, %s29
          %p826 = scmp.lt.s32.totalorder %s28, 1
          %s827 = scalar_select %p826, %s28, 1
          %p828 = scmp.lt.s32.totalorder %s825, 1
          %s829 = scalar_select %p828, %s825, 1
          %s830 = smul.addr %s827, 16
          %s831 = sadd.s32 %s829, %s830
          %s832 = smul.addr %s831, 4
          %s833 = scalar_lea.vmem %s6, %s832
        $region72: #{tpu_custom_call.1} parent=59 // pred_fallthru
          _
      $region60: #{tpu_custom_call.1} parent=5 // pred_fallthru
        _
    $region6: #{tpu_custom_call.1} parent=1 // loop_footer
      %s21 = sadd.s32 1, %s17
    $region7: #{tpu_custom_call.1} parent=1 // loop_footer_branch
      %16 = sbr.rel target = $region3
    $region8: #{tpu_custom_call.1} parent=1 // loop_exit
      _
    %834 = vsyncpa [#allocation3], 1
    %s835 = scalar_lea.sflag [#allocation3], 1
    %836 = vsyncpa %s835, 1
    %837 = vsyncpa [#allocation5], 1

// kernel: tpu_custom_call.1
$region0: #{tpu_custom_call.1}
  #allocation0 [shape = 'u32[]', space=smem, size = 0x4, offset = 0x4, fixed_abs, tag = 'smem constant byte address 0x4 - core index']
  #allocation1 [shape = 'u32[144,128]{1,0:T(1,128)}', space=vmem, size = 0x12000, scoped, tag = 'internal scratch']
  %s0 = inlined_call_operand.hbm [shape: f32[2,16,64], index: 0, kind: input, shape index: {}]
  %s1 = inlined_call_operand.vmem [shape: f32[2,6,64], index: 1, kind: input, shape index: {}]
  %s2 = inlined_call_operand.hbm [shape: bf16[64,192], index: 2, kind: input, shape index: {}]
  %s3 = inlined_call_operand.vmem [shape: f32[1,192], index: 3, kind: input, shape index: {}]
  %s4 = inlined_call_operand.vmem [shape: bf16[2,8,16,8], index: 4, kind: output, shape index: {0}]
  %s5 = inlined_call_operand.vmem [shape: bf16[2,8,16,8], index: 5, kind: output, shape index: {1}]
  %s6 = inlined_call_operand.vmem [shape: bf16[2,8,16,8], index: 6, kind: output, shape index: {2}]
  %7 = xla_tuple %s4, %s5, %s6
  %s8 = sld [smem:[#allocation0]]
  $region73: #{tpu_custom_call.1} parent=0
    _
  %s10 = ssub.s32 1, %s8
  %s11 = scalar_select 0, %s10, %s8
  $region1: #{tpu_custom_call.1} parent=0
    #allocation2 [shape = 'u8[16384]{0}', space=vmem, size = 0x4000, scoped, tag = 'input window, operand 0']
    #allocation3 [shape = 's32[2]{0}', space=sflag, size = 0x8, scoped, tag = 'scoped memory for tpu_custom_call.1']
    #allocation4 [shape = 'u8[32768]{0}', space=vmem, size = 0x8000, scoped, tag = 'input window, operand 2, single buffered']
    #allocation5 [shape = 's32[1]{0}', space=sflag, size = 0x4, scoped, tag = 'scoped memory for tpu_custom_call.1']
    %12 = vsyncpa [#allocation3], 0
    %s13 = scalar_lea.sflag [#allocation3], 1
    %14 = vsyncpa %s13, 0
    %15 = vsyncpa [#allocation5], 0
    loop: start=0, step=1, limit=4
    $region2: #{tpu_custom_call.1} parent=1 // loop_pre_header
      _
    $region3: #{tpu_custom_call.1} parent=1 // loop_header
      %s17 = sphi 0, %s21
      %p18 = scmp.ge.s32.totalorder %s17, 4
      %s24 = sphi 0, %s36
      %s25 = sphi 0, %s32
      %s26 = sphi 0, %s24
      %s27 = sphi 0, %s25
      %s28 = sphi 0, %s26
      %s29 = sphi 0, %s27
      %s41 = sphi 0, %s43
      %s44 = sphi 0, %s41
      %s45 = sphi 0, %s44
      %s61 = sphi 0, %s45
      %s67 = sphi 0, %s69
      %s70 = sphi 0, %s67
      %s71 = sphi 0, %s70
      %s87 = sphi 0, %s71
      %s91 = sphi 0, %s91
      %s93 = sphi 0, %s91
      %s94 = sphi 0, %s93
      %s108 = sphi 0, %s94
      %s112 = sphi 0, %s112
      %s114 = sphi 0, %s112
      %s115 = sphi 0, %s114
      %s129 = sphi 0, %s115
      %s137 = sphi 0, %s139
      %s140 = sphi 0, %s137
      %s141 = sphi 0, %s140
      %s157 = sphi 0, %s141
      %s165 = sphi 0, %s167
      %s168 = sphi 0, %s165
      %s169 = sphi 0, %s168
      %s185 = sphi 0, %s169
      %s193 = sphi 0, %s195
      %s196 = sphi 0, %s193
      %s197 = sphi 0, %s196
      %s213 = sphi 0, %s197
    $region4: #{tpu_custom_call.1} parent=1 // loop_header_branch
      %20 = sbr.rel (%p18) target = $region8
    $region5: #{tpu_custom_call.1} parent=1 // loop_body
      %s22 = ssub.s32 %s17, 1
      %s23 = ssub.s32 %s17, 2
      %s30 = sadd.s32 1, %s25
      %p31 = scmp.ge.s32.totalorder %s30, 1
      %s32 = scalar_select %p31, 0, %s30
      %s33 = sadd.s32 1, %s24
      %s34 = scalar_select %p31, %s33, %s24
      %p35 = scmp.ge.s32.totalorder %s34, 2
      %s36 = scalar_select %p35, 0, %s34
      %s37 = ssub.s32 %s24, %s36
      %s38 = ssub.s32 %s25, %s32
      %s39 = sor.u32 %s37, %s38
      %p40 = scmp.eq.s32.totalorder %s39, 0
      %s42 = sadd.s32 %s41, 1
      %s43 = scalar_select %p40, %s41, %s42
      %p46 = pneg %p40
      %p47 = scmp.eq.s32.totalorder %s17, 1
      %p48 = por %p46, %p47
      %p49 = scmp.ne.s32.totalorder %s41, %s44
      %p50 = scmp.eq.s32.totalorder %s17, 0
      %p51 = por %p49, %p50
      %p52 = scmp.ne.s32.totalorder %s41, %s44
      %p53 = scmp.eq.s32.totalorder %s22, 1
      %p54 = por %p52, %p53
      %p55 = scmp.ne.s32.totalorder %s44, %s45
      %p56 = scmp.eq.s32.totalorder %s22, 0
      %p57 = por %p55, %p56
      %p58 = scmp.ne.s32.totalorder %s44, %s45
      %p59 = scmp.eq.s32.totalorder %s23, 1
      %p60 = por %p58, %p59
      %p62 = scmp.ne.s32.totalorder %s45, %s61
      %p63 = scmp.eq.s32.totalorder %s23, 0
      %p64 = por %p62, %p63
      %s65 = ssub.s32 %s24, %s36
      %p66 = scmp.eq.s32.totalorder %s65, 0
      %s68 = sadd.s32 %s67, 1
      %s69 = scalar_select %p66, %s67, %s68
      %p72 = pneg %p66
      %p73 = scmp.eq.s32.totalorder %s17, 1
      %p74 = por %p72, %p73
      %p75 = scmp.ne.s32.totalorder %s67, %s70
      %p76 = scmp.eq.s32.totalorder %s17, 0
      %p77 = por %p75, %p76
      %p78 = scmp.ne.s32.totalorder %s67, %s70
      %p79 = scmp.eq.s32.totalorder %s22, 1
      %p80 = por %p78, %p79
      %p81 = scmp.ne.s32.totalorder %s70, %s71
      %p82 = scmp.eq.s32.totalorder %s22, 0
      %p83 = por %p81, %p82
      %p84 = scmp.ne.s32.totalorder %s70, %s71
      %p85 = scmp.eq.s32.totalorder %s23, 1
      %p86 = por %p84, %p85
      %p88 = scmp.ne.s32.totalorder %s71, %s87
      %p89 = scmp.eq.s32.totalorder %s23, 0
      %p90 = por %p88, %p89
      %s92 = sadd.s32 %s91, 1
      %p95 = scmp.eq.s32.totalorder %s17, 1
      %p96 = scmp.ne.s32.totalorder %s91, %s93
      %p97 = scmp.eq.s32.totalorder %s17, 0
      %p98 = por %p96, %p97
      %p99 = scmp.ne.s32.totalorder %s91, %s93
      %p100 = scmp.eq.s32.totalorder %s22, 1
      %p101 = por %p99, %p100
      %p102 = scmp.ne.s32.totalorder %s93, %s94
      %p103 = scmp.eq.s32.totalorder %s22, 0
      %p104 = por %p102, %p103
      %p105 = scmp.ne.s32.totalorder %s93, %s94
      %p106 = scmp.eq.s32.totalorder %s23, 1
      %p107 = por %p105, %p106
      %p109 = scmp.ne.s32.totalorder %s94, %s108
      %p110 = scmp.eq.s32.totalorder %s23, 0
      %p111 = por %p109, %p110
      %s113 = sadd.s32 %s112, 1
      %p116 = scmp.eq.s32.totalorder %s17, 1
      %p117 = scmp.ne.s32.totalorder %s112, %s114
      %p118 = scmp.eq.s32.totalorder %s17, 0
      %p119 = por %p117, %p118
      %p120 = scmp.ne.s32.totalorder %s112, %s114
      %p121 = scmp.eq.s32.totalorder %s22, 1
      %p122 = por %p120, %p121
      %p123 = scmp.ne.s32.totalorder %s114, %s115
      %p124 = scmp.eq.s32.totalorder %s22, 0
      %p125 = por %p123, %p124
      %p126 = scmp.ne.s32.totalorder %s114, %s115
      %p127 = scmp.eq.s32.totalorder %s23, 1
      %p128 = por %p126, %p127
      %p130 = scmp.ne.s32.totalorder %s115, %s129
      %p131 = scmp.eq.s32.totalorder %s23, 0
      %p132 = por %p130, %p131
      %s133 = ssub.s32 %s24, %s36
      %s134 = ssub.s32 %s25, %s32
      %s135 = sor.u32 %s133, %s134
      %p136 = scmp.eq.s32.totalorder %s135, 0
      %s138 = sadd.s32 %s137, 1
      %s139 = scalar_select %p136, %s137, %s138
      %p142 = pneg %p136
      %p143 = scmp.eq.s32.totalorder %s17, 1
      %p144 = por %p142, %p143
      %p145 = scmp.ne.s32.totalorder %s137, %s140
      %p146 = scmp.eq.s32.totalorder %s17, 0
      %p147 = por %p145, %p146
      %p148 = scmp.ne.s32.totalorder %s137, %s140
      %p149 = scmp.eq.s32.totalorder %s22, 1
      %p150 = por %p148, %p149
      %p151 = scmp.ne.s32.totalorder %s140, %s141
      %p152 = scmp.eq.s32.totalorder %s22, 0
      %p153 = por %p151, %p152
      %p154 = scmp.ne.s32.totalorder %s140, %s141
      %p155 = scmp.eq.s32.totalorder %s23, 1
      %p156 = por %p154, %p155
      %p158 = scmp.ne.s32.totalorder %s141, %s157
      %p159 = scmp.eq.s32.totalorder %s23, 0
      %p160 = por %p158, %p159
      %s161 = ssub.s32 %s24, %s36
      %s162 = ssub.s32 %s25, %s32
      %s163 = sor.u32 %s161, %s162
      %p164 = scmp.eq.s32.totalorder %s163, 0
      %s166 = sadd.s32 %s165, 1
      %s167 = scalar_select %p164, %s165, %s166
      %p170 = pneg %p164
      %p171 = scmp.eq.s32.totalorder %s17, 1
      %p172 = por %p170, %p171
      %p173 = scmp.ne.s32.totalorder %s165, %s168
      %p174 = scmp.eq.s32.totalorder %s17, 0
      %p175 = por %p173, %p174
      %p176 = scmp.ne.s32.totalorder %s165, %s168
      %p177 = scmp.eq.s32.totalorder %s22, 1
      %p178 = por %p176, %p177
      %p179 = scmp.ne.s32.totalorder %s168, %s169
      %p180 = scmp.eq.s32.totalorder %s22, 0
      %p181 = por %p179, %p180
      %p182 = scmp.ne.s32.totalorder %s168, %s169
      %p183 = scmp.eq.s32.totalorder %s23, 1
      %p184 = por %p182, %p183
      %p186 = scmp.ne.s32.totalorder %s169, %s185
      %p187 = scmp.eq.s32.totalorder %s23, 0
      %p188 = por %p186, %p187
      %s189 = ssub.s32 %s24, %s36
      %s190 = ssub.s32 %s25, %s32
      %s191 = sor.u32 %s189, %s190
      %p192 = scmp.eq.s32.totalorder %s191, 0
      %s194 = sadd.s32 %s193, 1
      %s195 = scalar_select %p192, %s193, %s194
      %p198 = pneg %p192
      %p199 = scmp.eq.s32.totalorder %s17, 1
      %p200 = por %p198, %p199
      %p201 = scmp.ne.s32.totalorder %s193, %s196
      %p202 = scmp.eq.s32.totalorder %s17, 0
      %p203 = por %p201, %p202
      %p204 = scmp.ne.s32.totalorder %s193, %s196
      %p205 = scmp.eq.s32.totalorder %s22, 1
      %p206 = por %p204, %p205
      %p207 = scmp.ne.s32.totalorder %s196, %s197
      %p208 = scmp.eq.s32.totalorder %s22, 0
      %p209 = por %p207, %p208
      %p210 = scmp.ne.s32.totalorder %s196, %s197
      %p211 = scmp.eq.s32.totalorder %s23, 1
      %p212 = por %p210, %p211
      %p214 = scmp.ne.s32.totalorder %s197, %s213
      %p215 = scmp.eq.s32.totalorder %s23, 0
      %p216 = por %p214, %p215
      %p217 = scmp.le.s32.totalorder 1, %s17
      %p218 = scmp.lt.s32.totalorder %s17, 3
      %p219 = pnand %p217, %p218
      %p220 = pneg %p219
      // Predicated region
      $region9: #{tpu_custom_call.1} parent=5 // pred_check
        _
      $region10: #{tpu_custom_call.1} parent=5 // pred_check_branch
        %222 = sbr.rel (%p219) target = $region12
      $region11: #{tpu_custom_call.1} parent=5 // pred_region
        %s223 = ssub.s32 %s17, 1
        // Predicated region
        $region13: #{tpu_custom_call.1} parent=11 // pred_check
          %p224 = pneg %p104
        $region14: #{tpu_custom_call.1} parent=11 // pred_check_branch
          %226 = sbr.rel (%p224) target = $region16
        $region15: #{tpu_custom_call.1} parent=11 // pred_region
          %s228 = ssub.s32 1024, 1024
          %229 = vsyncadd [#allocation5], %s228
          %s230 = sshll.u32 [#allocation4], 4
          %s231 = int_to_ptr.vmem [resolvable:$true] %s230
          %236 = dma.hbm_to_vmem [thread:$0]  %s2, 1024, %s231, [#allocation5], 128, 128, 8
        $region16: #{tpu_custom_call.1} parent=11 // pred_fallthru
          _
        // Predicated region
        $region17: #{tpu_custom_call.1} parent=11 // pred_check
          %p237 = pneg %p125
        $region18: #{tpu_custom_call.1} parent=11 // pred_check_branch
          %239 = sbr.rel (%p237) target = $region20
        $region19: #{tpu_custom_call.1} parent=11 // pred_region
          _
        $region20: #{tpu_custom_call.1} parent=11 // pred_fallthru
          _
      $region12: #{tpu_custom_call.1} parent=5 // pred_fallthru
        _
      %p240 = scmp.lt.s32.totalorder %s17, 2
      // Predicated region
      $region21: #{tpu_custom_call.1} parent=5 // pred_check
        %p241 = pneg %p240
      $region22: #{tpu_custom_call.1} parent=5 // pred_check_branch
        %243 = sbr.rel (%p241) target = $region24
      $region23: #{tpu_custom_call.1} parent=5 // pred_region
        // Predicated region
        $region25: #{tpu_custom_call.1} parent=23 // pred_check
          %p244 = pneg %p51
        $region26: #{tpu_custom_call.1} parent=23 // pred_check_branch
          %246 = sbr.rel (%p244) target = $region28
        $region27: #{tpu_custom_call.1} parent=23 // pred_region
          %s247 = sand.u32 %s41, 1
          %s248 = scalar_lea.sflag [#allocation3], %s247
          %s249 = sand.u32 %s41, 1
          %s250 = smul.addr %s249, 16
          %s251 = scalar_lea.vmem [#allocation2], %s250
          %s252 = smul.u32 2, %s25
          %s254 = ssub.s32 256, 256
          %255 = vsyncadd %s248, %s254
          %s256 = smul.addr %s24, 2
          %s257 = sadd.s32 %s252, %s256
          %s258 = smul.addr %s257, 128
          %s259 = scalar_lea.hbm %s0, %s258
          %s260 = sshll.u32 %s251, 4
          %s261 = int_to_ptr.vmem [resolvable:$true] %s260
          %266 = dma.hbm_to_vmem [thread:$0]  %s259, 256, %s261, %s248, 128, 128, 8
        $region28: #{tpu_custom_call.1} parent=23 // pred_fallthru
          _
        // Predicated region
        $region29: #{tpu_custom_call.1} parent=23 // pred_check
          %p267 = pneg %p77
        $region30: #{tpu_custom_call.1} parent=23 // pred_check_branch
          %269 = sbr.rel (%p267) target = $region32
        $region31: #{tpu_custom_call.1} parent=23 // pred_region
          %p270 = scmp.lt.s32.totalorder %s24, 1
          %s271 = scalar_select %p270, %s24, 1
          %s272 = smul.addr %s271, 8
          %s273 = scalar_lea.vmem %s1, %s272
        $region32: #{tpu_custom_call.1} parent=23 // pred_fallthru
          _
      $region24: #{tpu_custom_call.1} parent=5 // pred_fallthru
        _
      %p274 = scmp.le.s32.totalorder 1, %s17
      %p275 = scmp.lt.s32.totalorder %s17, 3
      %p276 = pnand %p274, %p275
      %p277 = pneg %p276
      // Predicated region
      $region33: #{tpu_custom_call.1} parent=5 // pred_check
        _
      $region34: #{tpu_custom_call.1} parent=5 // pred_check_branch
        %279 = sbr.rel (%p276) target = $region36
      $region35: #{tpu_custom_call.1} parent=5 // pred_region
        %s280 = ssub.s32 %s17, 1
        %s281 = sand.u32 %s44, 1
        %s282 = scalar_lea.sflag [#allocation3], %s281
        %s283 = sand.u32 %s44, 1
        %s284 = smul.addr %s283, 16
        %s285 = scalar_lea.vmem [#allocation2], %s284
        // Predicated region
        $region37: #{tpu_custom_call.1} parent=35 // pred_check
          %p286 = pneg %p57
        $region38: #{tpu_custom_call.1} parent=35 // pred_check_branch
          %288 = sbr.rel (%p286) target = $region40
        $region39: #{tpu_custom_call.1} parent=35 // pred_region
          %289 = dma.done %s282, 256
        $region40: #{tpu_custom_call.1} parent=35 // pred_fallthru
          _
        // Predicated region
        $region41: #{tpu_custom_call.1} parent=35 // pred_check
          %p290 = pneg %p104
        $region42: #{tpu_custom_call.1} parent=35 // pred_check_branch
          %292 = sbr.rel (%p290) target = $region44
        $region43: #{tpu_custom_call.1} parent=35 // pred_region
          %293 = dma.done [#allocation5], 1024
        $region44: #{tpu_custom_call.1} parent=35 // pred_fallthru
          _
        %s294 = sand.u32 %s44, 1
        %s295 = scalar_lea.sflag [#allocation3], %s294
        %s296 = sand.u32 %s44, 1
        %s297 = smul.addr %s296, 16
        %s298 = scalar_lea.vmem [#allocation2], %s297
        %p299 = pneg %p57
        %p300 = pneg %p54
        %p301 = scmp.lt.s32.totalorder %s26, 1
        %s302 = scalar_select %p301, %s26, 1
        %s303 = smul.addr %s302, 8
        %s304 = scalar_lea.vmem %s1, %s303
        %p305 = pneg %p83
        %p306 = pneg %p80
        %p307 = pneg %p104
        %p308 = pneg %p101
        %p309 = pneg %p125
        %p310 = pneg %p122
        %p311 = pneg %p153
        %p312 = pneg %p150
        %s313 = smul.u32 2, %s27
        %p314 = scmp.lt.s32.totalorder %s26, 1
        %s315 = scalar_select %p314, %s26, 1
        %p316 = scmp.lt.s32.totalorder %s313, 1
        %s317 = scalar_select %p316, %s313, 1
        %s318 = smul.addr %s315, 16
        %s319 = sadd.s32 %s317, %s318
        %s320 = smul.addr %s319, 4
        %s321 = scalar_lea.vmem %s4, %s320
        %p322 = pneg %p181
        %p323 = pneg %p178
        %s324 = smul.u32 2, %s27
        %p325 = scmp.lt.s32.totalorder %s26, 1
        %s326 = scalar_select %p325, %s26, 1
        %p327 = scmp.lt.s32.totalorder %s324, 1
        %s328 = scalar_select %p327, %s324, 1
        %s329 = smul.addr %s326, 16
        %s330 = sadd.s32 %s328, %s329
        %s331 = smul.addr %s330, 4
        %s332 = scalar_lea.vmem %s5, %s331
        %p333 = pneg %p209
        %p334 = pneg %p206
        %s335 = smul.u32 2, %s27
        %p336 = scmp.lt.s32.totalorder %s26, 1
        %s337 = scalar_select %p336, %s26, 1
        %p338 = scmp.lt.s32.totalorder %s335, 1
        %s339 = scalar_select %p338, %s335, 1
        %s340 = smul.addr %s337, 16
        %s341 = sadd.s32 %s339, %s340
        %s342 = smul.addr %s341, 4
        %s343 = scalar_lea.vmem %s6, %s342
        %s344 = smul.u32 2, %s27
        %p345 = scmp.lt.s32.totalorder %s26, 1
        %s346 = scalar_select %p345, %s26, 1
        %s347 = smul.addr %s346, 8
        %s348 = scalar_lea.vmem %s1, %s347
        %s349 = smul.u32 2, %s27
        %p350 = scmp.lt.s32.totalorder %s26, 1
        %s351 = scalar_select %p350, %s26, 1
        %p352 = scmp.lt.s32.totalorder %s349, 1
        %s353 = scalar_select %p352, %s349, 1
        %s354 = smul.addr %s351, 16
        %s355 = sadd.s32 %s353, %s354
        %s356 = smul.addr %s355, 4
        %s357 = scalar_lea.vmem %s4, %s356
        %s358 = smul.u32 2, %s27
        %s359 = smul.u32 2, %s27
        %p360 = scmp.lt.s32.totalorder %s26, 1
        %s361 = scalar_select %p360, %s26, 1
        %p362 = scmp.lt.s32.totalorder %s359, 1
        %s363 = scalar_select %p362, %s359, 1
        %s364 = smul.addr %s361, 16
        %s365 = sadd.s32 %s363, %s364
        %s366 = smul.addr %s365, 4
        %s367 = scalar_lea.vmem %s5, %s366
        %s368 = smul.u32 2, %s27
        %s369 = smul.u32 2, %s27
        %p370 = scmp.lt.s32.totalorder %s26, 1
        %s371 = scalar_select %p370, %s26, 1
        %p372 = scmp.lt.s32.totalorder %s369, 1
        %s373 = scalar_select %p372, %s369, 1
        %s374 = smul.addr %s371, 16
        %s375 = sadd.s32 %s373, %s374
        %s376 = smul.addr %s375, 4
        %s377 = scalar_lea.vmem %s6, %s376
        %s378 = smul.u32 2, %s27
        %v380 = vld [vmem:[%s285] sm:$0xff]
        %v381 = vld [vmem:[%s285 + $0x8] sm:$0xff]
        %v382 = vld [vmem:[%s348] sm:$0x3f]
        %vm383 = vcmask 523264
        %v384 = vsel %vm383, %v380, 0.0
        %385 = vadd.xlane.f32.xlu0 %v384
        %v386 = vpop.xlane.xlu0 %385
        %v387 = vsel %vm383, %v381, 0.0
        %388 = vadd.xlane.f32.xlu0 %v387
        %v389 = vpop.xlane.xlu0 %388
        %v390 = vrcp.pop 64.0
        %v391 = vmul.f32 %v386, %v390
        %v392 = vmul.f32 %v389, %v390
        %v393 = vmul.f32 %v380, %v380
        %v394 = vmul.f32 %v381, %v381
        %v395 = vsel %vm383, %v393, 0.0
        %396 = vadd.xlane.f32.xlu0 %v395
        %v397 = vpop.xlane.xlu0 %396
        %v398 = vsel %vm383, %v394, 0.0
        %399 = vadd.xlane.f32.xlu0 %v398
        %v400 = vpop.xlane.xlu0 %399
        %v401 = vmul.f32 %v397, %v390
        %v402 = vmul.f32 %v400, %v390
        %v403 = vmul.f32 %v391, %v391
        %v404 = vmul.f32 %v392, %v392
        %v405 = vsub.f32 %v401, %v403
        %v406 = vsub.f32 %v402, %v404
        %v407 = vmax.f32 %v405, 0.0
        %v408 = vmax.f32 %v406, 0.0
        %v409 = vsub.f32 %v380, %v391
        %v410 = vsub.f32 %v381, %v392
        %v411 = vadd.f32 %v407, 1e-05
        %v412 = vadd.f32 %v408, 1e-05
        %v413 = vrsqrt.pop %v411
        %v414 = vrsqrt.pop %v412
        %v415 = vmul.f32 %v409, %v413
        %v416 = vmul.f32 %v410, %v414
        %v417 = vlaneseq
        %v418 = vshrl.u32 %v417, 7
        %v419 = vsub.s32 1, %v418
        %v420 = vrot.slane %v382, %v419
        %v421 = vmul.f32 %v415, %v420
        %v422 = vmul.f32 %v416, %v420
        %v423 = vlaneseq
        %v424 = vshrl.u32 %v423, 7
        %v425 = vsub.s32 0, %v424
        %v426 = vrot.slane %v382, %v425
        %v427 = vadd.f32 %v421, %v426
        %v428 = vadd.f32 %v422, %v426
        %v429 = vpack.c.bf16 %v428, %v427
        %v430 = vld [vmem:[#allocation4] sm:$0xff]
        %v431 = vld [vmem:[#allocation4 + $0x8] sm:$0xff]
        %v432 = vld [vmem:[#allocation4 + $0x10] sm:$0xff]
        %v433 = vld [vmem:[#allocation4 + $0x18] sm:$0xff]
        %v434 = vld [vmem:[#allocation4 + $0x20] sm:$0xff]
        %v435 = vld [vmem:[#allocation4 + $0x28] sm:$0xff]
        %v436 = vld [vmem:[#allocation4 + $0x30] sm:$0xff]
        %v437 = vld [vmem:[#allocation4 + $0x38] sm:$0xff]
        %v438 = vld [vmem:[%s3] sm:$0x3]
        %v440 = vlaneseq
        %v441 = vshrl.u32 %v440, 7
        %v442 = vsub.s32 0, %v441
        %v443 = vrot.slane %v438, %v442
        %v444 = vlaneseq
        %v445 = vshrl.u32 %v444, 7
        %v446 = vsub.s32 1, %v445
        %v447 = vrot.slane %v438, %v446
        %v458 = vunpack.c.l.b16 %v430
        %v459 = vunpack.c.h.b16 %v430
        %v460 = vunpack.c.l.b16 %v431
        %v461 = vunpack.c.h.b16 %v431
        %v462 = vunpack.c.l.b16 %v432
        %v463 = vunpack.c.h.b16 %v432
        %v464 = vunpack.c.l.b16 %v433
        %v465 = vunpack.c.h.b16 %v433
        %v466 = vunpack.c.l.b16 %v434
        %v467 = vunpack.c.h.b16 %v434
        %v468 = vunpack.c.l.b16 %v435
        %v469 = vunpack.c.h.b16 %v435
        %v470 = vunpack.c.l.b16 %v436
        %v471 = vunpack.c.h.b16 %v436
        %v472 = vunpack.c.l.b16 %v437
        %v473 = vunpack.c.h.b16 %v437
        %v474 = vpack.c.b16 %v460, %v458
        %v475 = vpack.c.b16 %v461, %v459
        %v476 = vpack.c.b16 %v464, %v462
        %v477 = vpack.c.b16 %v465, %v463
        %v478 = vpack.c.b16 %v468, %v466
        %v479 = vpack.c.b16 %v469, %v467
        %v480 = vpack.c.b16 %v472, %v470
        %v481 = vpack.c.b16 %v473, %v471
        %v491 = vsel %vm383, %v429, 0
        %493 = vmatprep.subr.bf16.mxu0 0
        %494 = vmatpush1.bf16.msra.mxu0 0
        %495 = vmatprep.subr.bf16.mxu0 0
        %496 = vmatpush1.bf16.msra.mxu0 0
        %497 = vmatprep.subr.bf16.mxu0 0
        %498 = vmatpush1.bf16.msra.mxu0 0
        %499 = vmatprep.subr.bf16.mxu0 0
        %500 = vmatpush1.bf16.msra.mxu0 0
        %501 = vmatprep.subr.bf16.mxu0 %v481
        %502 = vmatpush1.bf16.msra.mxu0 %v480
        %503 = vmatprep.subr.bf16.mxu0 %v479
        %504 = vmatpush1.bf16.msra.mxu0 %v478
        %505 = vmatprep.subr.bf16.mxu0 %v477
        %506 = vmatpush1.bf16.msra.mxu0 %v476
        %507 = vmatprep.subr.bf16.mxu0 %v475
        %508 = vmatpush1.bf16.msra.mxu0 %v474
        %509 = vmatprep.subr.bf16.mxu0 0
        %510 = vmatpush2.bf16.msra.mxu0 0
        %511 = vmatprep.subr.bf16.mxu0 0
        %512 = vmatpush2.bf16.msra.mxu0 0
        %513 = vmatprep.subr.bf16.mxu0 0
        %514 = vmatpush2.bf16.msra.mxu0 0
        %515 = vmatprep.subr.bf16.mxu0 0
        %516 = vmatpush2.bf16.msra.mxu0 0
        %517 = vmatprep.subr.bf16.mxu0 0
        %518 = vmatpush2.bf16.msra.mxu0 0
        %519 = vmatprep.subr.bf16.mxu0 0
        %520 = vmatpush2.bf16.msra.mxu0 0
        %521 = vmatprep.subr.bf16.mxu0 0
        %522 = vmatpush2.bf16.msra.mxu0 0
        %523 = vmatprep.subr.bf16.mxu0 0
        %524 = vmatpush2.bf16.msra.mxu0 0
        %525 = vmatprep.mubr.bf16.mxu0 0
        %526 = vmatmul.mubr.bf16.gmra.mxu0 %v491
        %v527 = vpop.f32.mrf.mxu0
        %v528 = vadd.f32 %v443, %v527
        %v529 = vpop.f32.mrf.mxu0
        %v530 = vadd.f32 %v447, %v529
        %v531 = vpop.f32.mrf.mxu0
        %v532 = vadd.f32 %v443, %v531
        %v533 = vpop.f32.mrf.mxu0
        %v534 = vadd.f32 %v447, %v533
        %535 = vdwg.mxu0
        %v536 = vpack.c.bf16 %v532, %v528
        %v538 = vunpack.c.l.b16 %v536
        %v539 = vunpack.c.h.b16 %v536
        %v540 = vpack.c.b16 %v538, %v538
        %v541 = vpack.c.b16 %v539, %v539
        %vm544 = vcmask 60416
        %545 = vst.msk [vmem:[%s357] sm:$0xf] %vm544, %v540
        %546 = vst.msk [vmem:[%s357 + $0x4] sm:$0xf] %vm544, %v541
        %547 = vrot.lane.b32.xlu0 %v540, 64
        %v548 = vpop.permute.xlu0 %547
        %549 = vrot.lane.b32.xlu0 %v541, 64
        %v550 = vpop.permute.xlu0 %549
        %553 = vst.msk [vmem:[%s367] sm:$0xf] %vm544, %v548
        %554 = vst.msk [vmem:[%s367 + $0x4] sm:$0xf] %vm544, %v550
        %v555 = vpack.c.bf16 %v534, %v530
        %v557 = vunpack.c.l.b16 %v555
        %v558 = vunpack.c.h.b16 %v555
        %v559 = vpack.c.b16 %v557, %v557
        %v560 = vpack.c.b16 %v558, %v558
        %563 = vst.msk [vmem:[%s377] sm:$0xf] %vm544, %v559
        %564 = vst.msk [vmem:[%s377 + $0x4] sm:$0xf] %vm544, %v560
        %565 = vrot.lane.b32.xlu0 %v540, 120
        %v566 = vpop.permute.xlu0 %565
        %567 = vrot.lane.b32.xlu0 %v541, 120
        %v568 = vpop.permute.xlu0 %567
        %s571 = scalar_lea.vmem %s357, 8
        %572 = vst.msk [vmem:[%s571] sm:$0xf] %vm544, %v566
        %573 = vst.msk [vmem:[%s571 + $0x4] sm:$0xf] %vm544, %v568
        %574 = vrot.lane.b32.xlu0 %v540, 56
        %v575 = vpop.permute.xlu0 %574
        %576 = vrot.lane.b32.xlu0 %v541, 56
        %v577 = vpop.permute.xlu0 %576
        %s580 = scalar_lea.vmem %s367, 8
        %581 = vst.msk [vmem:[%s580] sm:$0xf] %vm544, %v575
        %582 = vst.msk [vmem:[%s580 + $0x4] sm:$0xf] %vm544, %v577
        %583 = vrot.lane.b32.xlu0 %v559, 120
        %v584 = vpop.permute.xlu0 %583
        %585 = vrot.lane.b32.xlu0 %v560, 120
        %v586 = vpop.permute.xlu0 %585
        %s589 = scalar_lea.vmem %s377, 8
        %590 = vst.msk [vmem:[%s589] sm:$0xf] %vm544, %v584
        %591 = vst.msk [vmem:[%s589 + $0x4] sm:$0xf] %vm544, %v586
        %592 = vrot.lane.b32.xlu0 %v540, 112
        %v593 = vpop.permute.xlu0 %592
        %594 = vrot.lane.b32.xlu0 %v541, 112
        %v595 = vpop.permute.xlu0 %594
        %s598 = scalar_lea.vmem %s357, 16
        %599 = vst.msk [vmem:[%s598] sm:$0xf] %vm544, %v593
        %600 = vst.msk [vmem:[%s598 + $0x4] sm:$0xf] %vm544, %v595
        %601 = vrot.lane.b32.xlu0 %v540, 48
        %v602 = vpop.permute.xlu0 %601
        %603 = vrot.lane.b32.xlu0 %v541, 48
        %v604 = vpop.permute.xlu0 %603
        %s607 = scalar_lea.vmem %s367, 16
        %608 = vst.msk [vmem:[%s607] sm:$0xf] %vm544, %v602
        %609 = vst.msk [vmem:[%s607 + $0x4] sm:$0xf] %vm544, %v604
        %610 = vrot.lane.b32.xlu0 %v559, 112
        %v611 = vpop.permute.xlu0 %610
        %612 = vrot.lane.b32.xlu0 %v560, 112
        %v613 = vpop.permute.xlu0 %612
        %s616 = scalar_lea.vmem %s377, 16
        %617 = vst.msk [vmem:[%s616] sm:$0xf] %vm544, %v611
        %618 = vst.msk [vmem:[%s616 + $0x4] sm:$0xf] %vm544, %v613
        %619 = vrot.lane.b32.xlu0 %v540, 104
        %v620 = vpop.permute.xlu0 %619
        %621 = vrot.lane.b32.xlu0 %v541, 104
        %v622 = vpop.permute.xlu0 %621
        %s625 = scalar_lea.vmem %s357, 24
        %626 = vst.msk [vmem:[%s625] sm:$0xf] %vm544, %v620
        %627 = vst.msk [vmem:[%s625 + $0x4] sm:$0xf] %vm544, %v622
        %628 = vrot.lane.b32.xlu0 %v540, 40
        %v629 = vpop.permute.xlu0 %628
        %630 = vrot.lane.b32.xlu0 %v541, 40
        %v631 = vpop.permute.xlu0 %630
        %s634 = scalar_lea.vmem %s367, 24
        %635 = vst.msk [vmem:[%s634] sm:$0xf] %vm544, %v629
        %636 = vst.msk [vmem:[%s634 + $0x4] sm:$0xf] %vm544, %v631
        %637 = vrot.lane.b32.xlu0 %v559, 104
        %v638 = vpop.permute.xlu0 %637
        %639 = vrot.lane.b32.xlu0 %v560, 104
        %v640 = vpop.permute.xlu0 %639
        %s643 = scalar_lea.vmem %s377, 24
        %644 = vst.msk [vmem:[%s643] sm:$0xf] %vm544, %v638
        %645 = vst.msk [vmem:[%s643 + $0x4] sm:$0xf] %vm544, %v640
        %646 = vrot.lane.b32.xlu0 %v540, 96
        %v647 = vpop.permute.xlu0 %646
        %648 = vrot.lane.b32.xlu0 %v541, 96
        %v649 = vpop.permute.xlu0 %648
        %s652 = scalar_lea.vmem %s357, 32
        %653 = vst.msk [vmem:[%s652] sm:$0xf] %vm544, %v647
        %654 = vst.msk [vmem:[%s652 + $0x4] sm:$0xf] %vm544, %v649
        %655 = vrot.lane.b32.xlu0 %v540, 32
        %v656 = vpop.permute.xlu0 %655
        %657 = vrot.lane.b32.xlu0 %v541, 32
        %v658 = vpop.permute.xlu0 %657
        %s661 = scalar_lea.vmem %s367, 32
        %662 = vst.msk [vmem:[%s661] sm:$0xf] %vm544, %v656
        %663 = vst.msk [vmem:[%s661 + $0x4] sm:$0xf] %vm544, %v658
        %664 = vrot.lane.b32.xlu0 %v559, 96
        %v665 = vpop.permute.xlu0 %664
        %666 = vrot.lane.b32.xlu0 %v560, 96
        %v667 = vpop.permute.xlu0 %666
        %s670 = scalar_lea.vmem %s377, 32
        %671 = vst.msk [vmem:[%s670] sm:$0xf] %vm544, %v665
        %672 = vst.msk [vmem:[%s670 + $0x4] sm:$0xf] %vm544, %v667
        %673 = vrot.lane.b32.xlu0 %v540, 88
        %v674 = vpop.permute.xlu0 %673
        %675 = vrot.lane.b32.xlu0 %v541, 88
        %v676 = vpop.permute.xlu0 %675
        %s679 = scalar_lea.vmem %s357, 40
        %680 = vst.msk [vmem:[%s679] sm:$0xf] %vm544, %v674
        %681 = vst.msk [vmem:[%s679 + $0x4] sm:$0xf] %vm544, %v676
        %682 = vrot.lane.b32.xlu0 %v540, 24
        %v683 = vpop.permute.xlu0 %682
        %684 = vrot.lane.b32.xlu0 %v541, 24
        %v685 = vpop.permute.xlu0 %684
        %s688 = scalar_lea.vmem %s367, 40
        %689 = vst.msk [vmem:[%s688] sm:$0xf] %vm544, %v683
        %690 = vst.msk [vmem:[%s688 + $0x4] sm:$0xf] %vm544, %v685
        %691 = vrot.lane.b32.xlu0 %v559, 88
        %v692 = vpop.permute.xlu0 %691
        %693 = vrot.lane.b32.xlu0 %v560, 88
        %v694 = vpop.permute.xlu0 %693
        %s697 = scalar_lea.vmem %s377, 40
        %698 = vst.msk [vmem:[%s697] sm:$0xf] %vm544, %v692
        %699 = vst.msk [vmem:[%s697 + $0x4] sm:$0xf] %vm544, %v694
        %700 = vrot.lane.b32.xlu0 %v540, 80
        %v701 = vpop.permute.xlu0 %700
        %702 = vrot.lane.b32.xlu0 %v541, 80
        %v703 = vpop.permute.xlu0 %702
        %s706 = scalar_lea.vmem %s357, 48
        %707 = vst.msk [vmem:[%s706] sm:$0xf] %vm544, %v701
        %708 = vst.msk [vmem:[%s706 + $0x4] sm:$0xf] %vm544, %v703
        %709 = vrot.lane.b32.xlu0 %v540, 16
        %v710 = vpop.permute.xlu0 %709
        %711 = vrot.lane.b32.xlu0 %v541, 16
        %v712 = vpop.permute.xlu0 %711
        %s715 = scalar_lea.vmem %s367, 48
        %716 = vst.msk [vmem:[%s715] sm:$0xf] %vm544, %v710
        %717 = vst.msk [vmem:[%s715 + $0x4] sm:$0xf] %vm544, %v712
        %718 = vrot.lane.b32.xlu0 %v559, 80
        %v719 = vpop.permute.xlu0 %718
        %720 = vrot.lane.b32.xlu0 %v560, 80
        %v721 = vpop.permute.xlu0 %720
        %s724 = scalar_lea.vmem %s377, 48
        %725 = vst.msk [vmem:[%s724] sm:$0xf] %vm544, %v719
        %726 = vst.msk [vmem:[%s724 + $0x4] sm:$0xf] %vm544, %v721
        %727 = vrot.lane.b32.xlu0 %v540, 72
        %v728 = vpop.permute.xlu0 %727
        %729 = vrot.lane.b32.xlu0 %v541, 72
        %v730 = vpop.permute.xlu0 %729
        %s733 = scalar_lea.vmem %s357, 56
        %734 = vst.msk [vmem:[%s733] sm:$0xf] %vm544, %v728
        %735 = vst.msk [vmem:[%s733 + $0x4] sm:$0xf] %vm544, %v730
        %736 = vrot.lane.b32.xlu0 %v540, 8
        %v737 = vpop.permute.xlu0 %736
        %738 = vrot.lane.b32.xlu0 %v541, 8
        %v739 = vpop.permute.xlu0 %738
        %s742 = scalar_lea.vmem %s367, 56
        %743 = vst.msk [vmem:[%s742] sm:$0xf] %vm544, %v737
        %744 = vst.msk [vmem:[%s742 + $0x4] sm:$0xf] %vm544, %v739
        %745 = vrot.lane.b32.xlu0 %v559, 72
        %v746 = vpop.permute.xlu0 %745
        %747 = vrot.lane.b32.xlu0 %v560, 72
        %v748 = vpop.permute.xlu0 %747
        %s751 = scalar_lea.vmem %s377, 56
        %752 = vst.msk [vmem:[%s751] sm:$0xf] %vm544, %v746
        %753 = vst.msk [vmem:[%s751 + $0x4] sm:$0xf] %vm544, %v748
        %s754 = smul.u32 2, %s27
        %p755 = scmp.lt.s32.totalorder %s26, 1
        %s756 = scalar_select %p755, %s26, 1
        %p757 = scmp.lt.s32.totalorder %s754, 1
        %s758 = scalar_select %p757, %s754, 1
        %s759 = smul.addr %s756, 16
        %s760 = sadd.s32 %s758, %s759
        %s761 = smul.addr %s760, 4
        %s762 = scalar_lea.vmem %s4, %s761
        %s763 = smul.u32 2, %s27
        %p764 = scmp.lt.s32.totalorder %s26, 1
        %s765 = scalar_select %p764, %s26, 1
        %p766 = scmp.lt.s32.totalorder %s763, 1
        %s767 = scalar_select %p766, %s763, 1
        %s768 = smul.addr %s765, 16
        %s769 = sadd.s32 %s767, %s768
        %s770 = smul.addr %s769, 4
        %s771 = scalar_lea.vmem %s5, %s770
        %s772 = smul.u32 2, %s27
        %p773 = scmp.lt.s32.totalorder %s26, 1
        %s774 = scalar_select %p773, %s26, 1
        %p775 = scmp.lt.s32.totalorder %s772, 1
        %s776 = scalar_select %p775, %s772, 1
        %s777 = smul.addr %s774, 16
        %s778 = sadd.s32 %s776, %s777
        %s779 = smul.addr %s778, 4
        %s780 = scalar_lea.vmem %s6, %s779
        // Predicated region
        $region45: #{tpu_custom_call.1} parent=35 // pred_check
          %p781 = pneg %p150
        $region46: #{tpu_custom_call.1} parent=35 // pred_check_branch
          %783 = sbr.rel (%p781) target = $region48
        $region47: #{tpu_custom_call.1} parent=35 // pred_region
          %s784 = smul.u32 2, %s27
        $region48: #{tpu_custom_call.1} parent=35 // pred_fallthru
          _
        // Predicated region
        $region49: #{tpu_custom_call.1} parent=35 // pred_check
          %p785 = pneg %p178
        $region50: #{tpu_custom_call.1} parent=35 // pred_check_branch
          %787 = sbr.rel (%p785) target = $region52
        $region51: #{tpu_custom_call.1} parent=35 // pred_region
          %s788 = smul.u32 2, %s27
        $region52: #{tpu_custom_call.1} parent=35 // pred_fallthru
          _
        // Predicated region
        $region53: #{tpu_custom_call.1} parent=35 // pred_check
          %p789 = pneg %p206
        $region54: #{tpu_custom_call.1} parent=35 // pred_check_branch
          %791 = sbr.rel (%p789) target = $region56
        $region55: #{tpu_custom_call.1} parent=35 // pred_region
          %s792 = smul.u32 2, %s27
        $region56: #{tpu_custom_call.1} parent=35 // pred_fallthru
          _
      $region36: #{tpu_custom_call.1} parent=5 // pred_fallthru
        _
      %p793 = scmp.le.s32.totalorder 2, %s17
      // Predicated region
      $region57: #{tpu_custom_call.1} parent=5 // pred_check
        %p794 = pneg %p793
      $region58: #{tpu_custom_call.1} parent=5 // pred_check_branch
        %796 = sbr.rel (%p794) target = $region60
      $region59: #{tpu_custom_call.1} parent=5 // pred_region
        %s797 = ssub.s32 %s17, 2
        // Predicated region
        $region61: #{tpu_custom_call.1} parent=59 // pred_check
          %p798 = pneg %p156
        $region62: #{tpu_custom_call.1} parent=59 // pred_check_branch
          %800 = sbr.rel (%p798) target = $region64
        $region63: #{tpu_custom_call.1} parent=59 // pred_region
          %s801 = smul.u32 2, %s29
          %p802 = scmp.lt.s32.totalorder %s28, 1
          %s803 = scalar_select %p802, %s28, 1
          %p804 = scmp.lt.s32.totalorder %s801, 1
          %s805 = scalar_select %p804, %s801, 1
          %s806 = smul.addr %s803, 16
          %s807 = sadd.s32 %s805, %s806
          %s808 = smul.addr %s807, 4
          %s809 = scalar_lea.vmem %s4, %s808
        $region64: #{tpu_custom_call.1} parent=59 // pred_fallthru
          _
        // Predicated region
        $region65: #{tpu_custom_call.1} parent=59 // pred_check
          %p810 = pneg %p184
        $region66: #{tpu_custom_call.1} parent=59 // pred_check_branch
          %812 = sbr.rel (%p810) target = $region68
        $region67: #{tpu_custom_call.1} parent=59 // pred_region
          %s813 = smul.u32 2, %s29
          %p814 = scmp.lt.s32.totalorder %s28, 1
          %s815 = scalar_select %p814, %s28, 1
          %p816 = scmp.lt.s32.totalorder %s813, 1
          %s817 = scalar_select %p816, %s813, 1
          %s818 = smul.addr %s815, 16
          %s819 = sadd.s32 %s817, %s818
          %s820 = smul.addr %s819, 4
          %s821 = scalar_lea.vmem %s5, %s820
        $region68: #{tpu_custom_call.1} parent=59 // pred_fallthru
          _
        // Predicated region
        $region69: #{tpu_custom_call.1} parent=59 // pred_check
          %p822 = pneg %p212
        $region70: #{tpu_custom_call.1} parent=59 // pred_check_branch
          %824 = sbr.rel (%p822) target = $region72
        $region71: #{tpu_custom_call.1} parent=59 // pred_region
          %s825 = smul.u32 2, %s29
          %p826 = scmp.lt.s32.totalorder %s28, 1
          %s827 = scalar_select %p826, %s28, 1
          %p828 = scmp.lt.s32.totalorder %s825, 1
          %s829 = scalar_select %p828, %s825, 1
          %s830 = smul.addr %s827, 16
          %s831 = sadd.s32 %s829, %s830
          %s832 = smul.addr %s831, 4
          %s833 = scalar_lea.vmem %s6, %s832
        $region72: #{tpu_custom_call.1} parent=59 // pred_fallthru
          _
      $region60: #{tpu_custom_call.1} parent=5 // pred_fallthru
        _
    $region6: #{tpu_custom_call.1} parent=1 // loop_footer
      %s21 = sadd.s32 1, %s17
    $region7: #{tpu_custom_call.1} parent=1 // loop_footer_branch
      %16 = sbr.rel target = $region3
    $region8: #{tpu_custom_call.1} parent=1 // loop_exit
      _
    %834 = vsyncpa [#allocation3], 1
    %s835 = scalar_lea.sflag [#allocation3], 1
    %836 = vsyncpa %s835, 1
    %837 = vsyncpa [#allocation5], 1

</llo_original>
